<compile_context>
chip_gen: v6e
topology: v6e:2x2x1
jax: 0.10.0
libtpu: 0.0.40
codegen_flags: <defaults>
</compile_context>

<pallas_src>
import functools

import jax
import jax.numpy as jnp
from jax.experimental import pallas as pl
from jax.experimental.pallas import tpu as pltpu

EPS = 1e-8


def _round_up(n, m):
    return ((n + m - 1) // m) * m


def depthconv1d_kernel(x_ref, w1_ref, hp_ref, wout_ref, bout_ref,
                       *out_and_scratch,
                       kernel, dilation, padding, lpad,
                       t_real, t_out_real, h_real):
    hbuf = out_and_scratch[-1]          # (H_pad, W) f32 halo scratch
    out_refs = out_and_scratch[:-1]     # res ref [, skip ref]

    Bb = x_ref.shape[0]
    H_pad = w1_ref.shape[0]
    T_pad = x_ref.shape[2]
    T_out_pad = out_refs[0].shape[2]
    W = hbuf.shape[1]
    n_res = out_refs[0].shape[1]

    # packed per-hidden-channel params (one small DMA), loaded once per step:
    #   columns [b1, g1, be1, bd, g2, be2, a1, a2, wd_0 .. wd_{K-1}]
    hp = hp_ref[...]
    b1, g1, be1 = hp[:, 0:1], hp[:, 1:2], hp[:, 2:3]
    bd, g2, be2 = hp[:, 3:4], hp[:, 4:5], hp[:, 5:6]
    a1, a2 = hp[:, 6:7], hp[:, 7:8]
    wd = hp[:, 8:8 + kernel]

    w1 = w1_ref[...]                    # bf16 (H_pad, C_pad)
    wout = wout_ref[...]                # f32  (C_out_tot, H_pad)
    bout = bout_ref[...]                # f32  (C_out_tot, 1)

    inv_n1 = 1.0 / float(h_real * t_real)
    inv_n2 = 1.0 / float(h_real * t_out_real)
    time_padded = T_pad != t_real
    out_padded = T_out_pad != t_out_real

    # Zero the halo regions of the depthwise scratch once per grid step (they
    # are never written below; the h region is overwritten each sample).
    if lpad > 0:
        hbuf[:, :lpad] = jnp.zeros((H_pad, lpad), jnp.float32)
    if W > lpad + T_pad:
        hbuf[:, lpad + T_pad:] = jnp.zeros((H_pad, W - lpad - T_pad), jnp.float32)

    if time_padded:
        tmask = (jax.lax.broadcasted_iota(jnp.int32, (1, T_pad), 1)
                 < t_real).astype(jnp.float32)
        # Analytic GN1 pad correction: every padded time column of h equals
        # PReLU(b1) channel-wise (zero x columns -> matmul 0 -> +b1 -> PReLU),
        # so subtract that contribution instead of masking the whole slab.
        pb = jnp.where(b1 >= 0, b1, a1 * b1)
        pad_cols = float(T_pad - t_real)
        pad_s = pad_cols * jnp.sum(pb)
        pad_ss = pad_cols * jnp.sum(pb * pb)
    if out_padded:
        omask = (jax.lax.broadcasted_iota(jnp.int32, (1, T_out_pad), 1)
                 < t_out_real).astype(jnp.float32)

    for b in range(Bb):
        # ---- 1x1 conv (MXU, bf16 operands / f32 accum) + PReLU ---------------
        h = jnp.dot(w1, x_ref[b], preferred_element_type=jnp.float32) + b1
        h = jnp.where(h >= 0, h, a1 * h)

        # ---- GroupNorm(1, H): fused sums + folded affine (single FMA) --------
        s = jnp.sum(h)
        ss = jnp.sum(h * h)
        if time_padded:
            s = s - pad_s
            ss = ss - pad_ss
        mean = s * inv_n1
        var = jnp.maximum(ss * inv_n1 - mean * mean, 0.0)
        scale1 = jax.lax.rsqrt(var + EPS) * g1
        shift1 = be1 - mean * scale1
        h = h * scale1 + shift1
        if time_padded:
            h = h * tmask               # single re-zero before the depthwise conv

        # ---- depthwise conv (groups = H) via lane-aligned halo scratch -------
        hbuf[:, lpad:lpad + T_pad] = h              # aligned store, no concat copy
        hb = hbuf[...]
        st = lpad - padding
        acc = bd + wd[:, 0:1] * hb[:, st:st + T_out_pad]
        for k in range(1, kernel):
            st = lpad + k * dilation - padding
            acc = acc + wd[:, k:k + 1] * hb[:, st:st + T_out_pad]

        # ---- PReLU -> GroupNorm(1, H) (folded affine) -------------------------
        h2 = jnp.where(acc >= 0, acc, a2 * acc)
        if out_padded:
            h2 = h2 * omask
        s2 = jnp.sum(h2)
        ss2 = jnp.sum(h2 * h2)
        mean2 = s2 * inv_n2
        var2 = jnp.maximum(ss2 * inv_n2 - mean2 * mean2, 0.0)
        scale2 = jax.lax.rsqrt(var2 + EPS) * g2
        shift2 = be2 - mean2 * scale2
        h2 = h2 * scale2 + shift2

        # ---- fused residual(+skip) 1x1 conv (single f32 MXU pass) ------------
        out = jnp.dot(wout, h2, preferred_element_type=jnp.float32) + bout
        out_refs[0][b] = out[:n_res].astype(out_refs[0].dtype)
        if len(out_refs) == 2:
            out_refs[1][b] = out[n_res:].astype(out_refs[1].dtype)


def depthconv1d_q(x, params, *, kernel, dilation, padding, skip=False,
                  channel_align=8, time_align=128):
    """Forward pass of DepthConv1d_Q (non-causal, QA_flag=False)."""
    B, C_in, T = x.shape
    H = params["w1"].shape[0]
    T_out = T + 2 * padding - dilation * (kernel - 1)
    assert T_out > 0, "non-positive output length"

    C_pad = _round_up(C_in, channel_align)
    H_pad = _round_up(H, channel_align)
    T_pad = _round_up(T, time_align)
    T_out_pad = _round_up(T_out, time_align)

    # Depthwise halo-scratch geometry: left halo lane-aligned so the h store is
    # an aligned full-lane store; right halo covers the widest tap window.
    lpad = _round_up(padding, time_align)
    right = max(T_pad, (kernel - 1) * dilation - padding + T_out_pad)
    W = _round_up(lpad + right, time_align)

    f32 = jnp.float32

    def pad2(a, r, c):
        a = jnp.asarray(a, f32)
        return jnp.pad(a, ((0, r - a.shape[0]), (0, c - a.shape[1])))

    def prelu_col(a):
        a = jnp.asarray(a, f32).reshape(-1, 1)
        if a.shape[0] == 1:                       # scalar PReLU (default)
            a = jnp.broadcast_to(a, (H, 1))
        return pad2(a, H_pad, 1)

    # input 1x1 conv weight in bf16 (MXU operand path only).
    w1 = pad2(params["w1"], H_pad, C_pad).astype(jnp.bfloat16)     # (H_pad, C_pad)

    # all per-hidden-channel params packed into one array (one DMA per step).
    hpack = jnp.concatenate(
        [pad2(params["b1"], H_pad, 1),
         pad2(params["g1"], H_pad, 1),
         pad2(params["be1"], H_pad, 1),
         pad2(params["bd"], H_pad, 1),
         pad2(params["g2"], H_pad, 1),
         pad2(params["be2"], H_pad, 1),
         prelu_col(params["a1"]),
         prelu_col(params["a2"]),
         pad2(params["wd"], H_pad, kernel)], axis=1)               # (H_pad, 8+K)

    # res(+skip) 1x1 conv fused into a single f32 weight / bias (one MXU pass).
    w3 = pad2(params["w3"], C_pad, H_pad)
    b3 = pad2(params["b3"], C_pad, 1)
    if skip:
        wout = jnp.concatenate([w3, pad2(params["ws"], C_pad, H_pad)], axis=0)
        bout = jnp.concatenate([b3, pad2(params["bs"], C_pad, 1)], axis=0)
    else:
        wout, bout = w3, b3
    C_out_tot = wout.shape[0]

    # activation DMA'd in bf16 (halves HBM->VMEM traffic and the x double-buffer).
    xp = jnp.pad(x.astype(jnp.bfloat16),
                 ((0, 0), (0, C_pad - C_in), (0, T_pad - T)))

    # ---- batch blocking + VMEM budget ----------------------------------------
    n_out = 2 if skip else 1
    out_isize = x.dtype.itemsize
    try:
        vmem_cap = int(pltpu.get_tpu_info().vmem_capacity_bytes)
    except Exception:
        vmem_cap = 64 << 20                      # safe floor (v7x per-TC VMEM)
    per_sample_tile = C_pad * T_pad * 2 + n_out * C_pad * T_out_pad * out_isize
    per_sample_live = 6 * H_pad * max(T_pad, T_out_pad) * 4
    fixed = (H_pad * W * 4                       # depthwise halo scratch
             + 2 * H_pad * C_pad * 2             # w1 (double-buffered)
             + 2 * C_out_tot * H_pad * 4         # wout
             + 2 * H_pad * (8 + kernel) * 4      # hpack
             + (1 << 20))                        # misc margin

    bb = 1
    if per_sample_tile < (512 << 10):
        # Fatten per-step DMA tiles for small slabs, but keep >=2 grid steps
        # when B >= 2 so both v7x TensorCores get work.
        cap = min(8, max(1, B // 2))
        budget = vmem_cap // 2
        for cand in range(1, cap + 1):
            if B % cand:
                continue
            need_c = fixed + cand * per_sample_live + 2 * cand * per_sample_tile
            if need_c <= budget and cand * per_sample_tile <= (4 << 20):
                bb = cand

    need = fixed + bb * per_sample_live + 2 * bb * per_sample_tile
    vmem_ceiling = max(32 << 20, min(vmem_cap * 3 // 4, 100 << 20))
    vmem_limit = int(min(max(need * 5 // 4, 32 << 20), vmem_ceiling))

    kernel_fn = functools.partial(
        depthconv1d_kernel, kernel=kernel, dilation=dilation, padding=padding,
        lpad=lpad, t_real=T, t_out_real=T_out, h_real=H)

    out_block = pl.BlockSpec((bb, C_pad, T_out_pad), lambda g: (g, 0, 0))
    in_specs = [
        pl.BlockSpec((bb, C_pad, T_pad), lambda g: (g, 0, 0)),
        pl.BlockSpec((H_pad, C_pad), lambda g: (0, 0)),
        pl.BlockSpec((H_pad, 8 + kernel), lambda g: (0, 0)),
        pl.BlockSpec((C_out_tot, H_pad), lambda g: (0, 0)),
        pl.BlockSpec((C_out_tot, 1), lambda g: (0, 0)),
    ]
    if skip:
        out_shape = (jax.ShapeDtypeStruct((B, C_pad, T_out_pad), x.dtype),
                     jax.ShapeDtypeStruct((B, C_pad, T_out_pad), x.dtype))
        out_specs = (out_block, out_block)
    else:
        out_shape = jax.ShapeDtypeStruct((B, C_pad, T_out_pad), x.dtype)
        out_specs = out_block

    result = pl.pallas_call(
        kernel_fn,
        out_shape=out_shape,
        grid_spec=pltpu.PrefetchScalarGridSpec(
            num_scalar_prefetch=0,
            grid=(B // bb,),
            in_specs=in_specs,
            out_specs=out_specs,
            scratch_shapes=[pltpu.VMEM((H_pad, W), jnp.float32)]),
        compiler_params=pltpu.CompilerParams(
            dimension_semantics=("parallel",),
            vmem_limit_bytes=vmem_limit),
    )(xp, w1, hpack, wout, bout)

    if skip:
        res, sk = result
        return res[:, :C_in, :T_out], sk[:, :C_in, :T_out]
    return result[:, :C_in, :T_out]


# ----------------------- pure-JAX reference (for checking) -------------------
def ref_forward(x, p, *, kernel, dilation, padding, skip=False):
    T = x.shape[2]
    T_out = T + 2 * padding - dilation * (kernel - 1)

    def gn(h, g, be):
        mean = jnp.mean(h, axis=(1, 2), keepdims=True)
        var = jnp.mean((h - mean) ** 2, axis=(1, 2), keepdims=True)
        return (h - mean) / jnp.sqrt(var + EPS) * g[None] + be[None]

    def prelu(h, a):
        a = jnp.asarray(a, jnp.float32).reshape(-1, 1)
        return jnp.where(h >= 0, h, a[None] * h)

    h = jnp.einsum("hc,bct->bht", p["w1"], x) + p["b1"][None]
    h = gn(prelu(h, p["a1"]), p["g1"], p["be1"])

    hp = jnp.pad(h, ((0, 0), (0, 0), (padding, padding)))
    acc = jnp.zeros((x.shape[0], p["w1"].shape[0], T_out), jnp.float32) + p["bd"][None]
    for k in range(kernel):
        s = k * dilation
        acc = acc + p["wd"][None, :, k:k + 1] * hp[:, :, s:s + T_out]
    h2 = gn(prelu(acc, p["a2"]), p["g2"], p["be2"])

    res = jnp.einsum("ch,bht->bct", p["w3"], h2) + p["b3"][None]
    if skip:
        return res, jnp.einsum("ch,bht->bct", p["ws"], h2) + p["bs"][None]
    return res


def _make_params(key, C_in, H, kernel):
    ks = jax.random.split(key, 12)
    return {
        "w1": 0.1 * jax.random.normal(ks[0], (H, C_in), jnp.float32),
        "b1": 0.1 * jax.random.normal(ks[1], (H, 1), jnp.float32),
        "a1": jnp.full((1, 1), 0.25, jnp.float32),
        "g1": 1.0 + 0.1 * jax.random.normal(ks[2], (H, 1), jnp.float32),
        "be1": 0.1 * jax.random.normal(ks[3], (H, 1), jnp.float32),
        "wd": 0.1 * jax.random.normal(ks[4], (H, kernel), jnp.float32),
        "bd": 0.1 * jax.random.normal(ks[5], (H, 1), jnp.float32),
        "a2": jnp.full((1, 1), 0.25, jnp.float32),
        "g2": 1.0 + 0.1 * jax.random.normal(ks[6], (H, 1), jnp.float32),
        "be2": 0.1 * jax.random.normal(ks[7], (H, 1), jnp.float32),
        "w3": 0.1 * jax.random.normal(ks[8], (C_in, H), jnp.float32),
        "b3": 0.1 * jax.random.normal(ks[9], (C_in, 1), jnp.float32),
        "ws": 0.1 * jax.random.normal(ks[10], (C_in, H), jnp.float32),
        "bs": 0.1 * jax.random.normal(ks[11], (C_in, 1), jnp.float32),
    }


def _check(name, got, want, atol=5e-2, rtol=5e-2):
    got = jax.block_until_ready(got)
    assert got.shape == want.shape, (name, got.shape, want.shape)
    assert jnp.allclose(got, want, rtol=rtol, atol=atol), (
        f"{name}: max abs err {jnp.max(jnp.abs(got - want))}")


if __name__ == "__main__":
    key = jax.random.PRNGKey(0)
    k_p1, k_x1, k_p2, k_x2, k_p3, k_x3 = jax.random.split(key, 6)

    # Case 1: lane/MXU-aligned shapes, skip=True (fused res+skip matmul, two outs).
    B, C_in, H, T = 2, 64, 128, 128
    K, dil, pad = 3, 2, 2                        # T_out = 128
    params = _make_params(k_p1, C_in, H, K)
    x = jax.random.normal(k_x1, (B, C_in, T), jnp.float32)
    res, sk = depthconv1d_q(x, params, kernel=K, dilation=dil, padding=pad, skip=True)
    res_r, sk_r = ref_forward(x, params, kernel=K, dilation=dil, padding=pad, skip=True)
    _check("res", res, res_r)
    _check("skip", sk, sk_r)

    # Case 2: unaligned channels / time (padding masks + analytic GN correction).
    B, C_in, H, T = 2, 20, 36, 50
    K, dil, pad = 3, 2, 1                        # T_out = 48
    params = _make_params(k_p2, C_in, H, K)
    x = jax.random.normal(k_x2, (B, C_in, T), jnp.float32)
    out = depthconv1d_q(x, params, kernel=K, dilation=dil, padding=pad, skip=False)
    out_r = ref_forward(x, params, kernel=K, dilation=dil, padding=pad, skip=False)
    _check("res_noskip", out, out_r)

    # Case 3: small slabs, larger batch (exercises batch blocking per grid step).
    B, C_in, H, T = 8, 16, 24, 32
    K, dil, pad = 3, 1, 1                        # T_out = 32
    params = _make_params(k_p3, C_in, H, K)
    x = jax.random.normal(k_x3, (B, C_in, T), jnp.float32)
    res, sk = depthconv1d_q(x, params, kernel=K, dilation=dil, padding=pad, skip=True)
    res_r, sk_r = ref_forward(x, params, kernel=K, dilation=dil, padding=pad, skip=True)
    _check("res_batched", res, res_r)
    _check("skip_batched", sk, sk_r)

    print("KERNEL_OK")
</pallas_src>

<mosaic_0001>
module attributes {stable_mosaic.version = 11 : i64} {
  func.func @depthconv1d_kernel(%arg0: i32, %arg1: memref<1x64x128xbf16, #tpu.memory_space<vmem>>, %arg2: memref<128x64xbf16, #tpu.memory_space<vmem>>, %arg3: memref<128x11xf32, #tpu.memory_space<vmem>>, %arg4: memref<128x128xf32, #tpu.memory_space<vmem>>, %arg5: memref<128x1xf32, #tpu.memory_space<vmem>>, %arg6: memref<1x64x128xf32, #tpu.memory_space<vmem>>, %arg7: memref<1x64x128xf32, #tpu.memory_space<vmem>>, %arg8: memref<128x384xf32, #tpu.memory_space<vmem>>) attributes {dimension_semantics = [#tpu.dimension_semantics<parallel>], iteration_bounds = array<i64: 2>, scalar_prefetch = 0 : i64, scratch_operands = 1 : i64, tpu.core_type = #tpu.core_type<tc>, window_params = [{transform_indices = @transform_0, window_bounds = array<i64: 1, 64, 128>}, {pipeline_mode = #tpu.pipeline_mode<synchronous>, transform_indices = @transform_1, window_bounds = array<i64: 128, 64>}, {pipeline_mode = #tpu.pipeline_mode<synchronous>, transform_indices = @transform_2, window_bounds = array<i64: 128, 11>}, {pipeline_mode = #tpu.pipeline_mode<synchronous>, transform_indices = @transform_3, window_bounds = array<i64: 128, 128>}, {pipeline_mode = #tpu.pipeline_mode<synchronous>, transform_indices = @transform_4, window_bounds = array<i64: 128, 1>}, {transform_indices = @transform_5, window_bounds = array<i64: 1, 64, 128>}, {transform_indices = @transform_6, window_bounds = array<i64: 1, 64, 128>}]} {
    %c0 = arith.constant 0 : index
    %c0_0 = arith.constant 0 : index
    %0 = vector.load %arg3[%c0, %c0_0] : memref<128x11xf32, #tpu.memory_space<vmem>>, vector<128x11xf32>
    %1 = vector.extract_strided_slice %0 {offsets = [0, 0], sizes = [128, 1], strides = [1, 1]} : vector<128x11xf32> to vector<128x1xf32>
    %2 = vector.extract_strided_slice %0 {offsets = [0, 1], sizes = [128, 1], strides = [1, 1]} : vector<128x11xf32> to vector<128x1xf32>
    %3 = vector.extract_strided_slice %0 {offsets = [0, 2], sizes = [128, 1], strides = [1, 1]} : vector<128x11xf32> to vector<128x1xf32>
    %4 = vector.extract_strided_slice %0 {offsets = [0, 3], sizes = [128, 1], strides = [1, 1]} : vector<128x11xf32> to vector<128x1xf32>
    %5 = vector.extract_strided_slice %0 {offsets = [0, 4], sizes = [128, 1], strides = [1, 1]} : vector<128x11xf32> to vector<128x1xf32>
    %6 = vector.extract_strided_slice %0 {offsets = [0, 5], sizes = [128, 1], strides = [1, 1]} : vector<128x11xf32> to vector<128x1xf32>
    %7 = vector.extract_strided_slice %0 {offsets = [0, 6], sizes = [128, 1], strides = [1, 1]} : vector<128x11xf32> to vector<128x1xf32>
    %8 = vector.extract_strided_slice %0 {offsets = [0, 7], sizes = [128, 1], strides = [1, 1]} : vector<128x11xf32> to vector<128x1xf32>
    %9 = vector.extract_strided_slice %0 {offsets = [0, 8], sizes = [128, 3], strides = [1, 1]} : vector<128x11xf32> to vector<128x3xf32>
    %c0_1 = arith.constant 0 : index
    %c0_2 = arith.constant 0 : index
    %10 = vector.load %arg2[%c0_1, %c0_2] : memref<128x64xbf16, #tpu.memory_space<vmem>>, vector<128x64xbf16>
    %c0_3 = arith.constant 0 : index
    %c0_4 = arith.constant 0 : index
    %11 = vector.load %arg4[%c0_3, %c0_4] : memref<128x128xf32, #tpu.memory_space<vmem>>, vector<128x128xf32>
    %c0_5 = arith.constant 0 : index
    %c0_6 = arith.constant 0 : index
    %12 = vector.load %arg5[%c0_5, %c0_6] : memref<128x1xf32, #tpu.memory_space<vmem>>, vector<128x1xf32>
    %cst = arith.constant 0.000000e+00 : f32
    %13 = vector.broadcast %cst : f32 to vector<128x128xf32>
    %c0_7 = arith.constant 0 : index
    %c0_8 = arith.constant 0 : index
    %14 = vector.load %arg8[%c0_7, %c0_8] : memref<128x384xf32, #tpu.memory_space<vmem>>, vector<128x128xf32>
    tpu.vector_store %arg8[%c0_7, %c0_8], %13 {strides = array<i32>} : memref<128x384xf32, #tpu.memory_space<vmem>>, vector<128x128xf32>,
    %cst_9 = arith.constant 0.000000e+00 : f32
    %15 = vector.broadcast %cst_9 : f32 to vector<128x128xf32>
    %c0_10 = arith.constant 0 : index
    %c256 = arith.constant 256 : index
    %16 = vector.load %arg8[%c0_10, %c256] : memref<128x384xf32, #tpu.memory_space<vmem>>, vector<128x128xf32>
    tpu.vector_store %arg8[%c0_10, %c256], %15 {strides = array<i32>} : memref<128x384xf32, #tpu.memory_space<vmem>>, vector<128x128xf32>,
    %c0_11 = arith.constant 0 : index
    %c0_12 = arith.constant 0 : index
    %c0_13 = arith.constant 0 : index
    %17 = vector.load %arg1[%c0_11, %c0_12, %c0_13] : memref<1x64x128xbf16, #tpu.memory_space<vmem>>, vector<1x64x128xbf16>
    %18 = vector.shape_cast %17 : vector<1x64x128xbf16> to vector<64x128xbf16>
    %cst_14 = arith.constant dense<0.000000e+00> : vector<128x128xf32>
    %19 = tpu.matmul %10, %18, %cst_14 {dimension_numbers = #tpu.dot_dimension_numbers<[1], [0], [0], [1], [0, 0, 1, 1], [], []>} : vector<128x64xbf16>, vector<64x128xbf16>, vector<128x128xf32> -> vector<128x128xf32>
    %20 = vector.broadcast %1 : vector<128x1xf32> to vector<128x128xf32>
    %21 = arith.addf %19, %20 : vector<128x128xf32>
    %cst_15 = arith.constant 0.000000e+00 : f32
    %22 = vector.broadcast %cst_15 : f32 to vector<128x128xf32>
    %23 = arith.cmpf oge, %21, %22 : vector<128x128xf32>
    %24 = vector.broadcast %7 : vector<128x1xf32> to vector<128x128xf32>
    %25 = arith.mulf %24, %21 : vector<128x128xf32>
    %26 = arith.select %23, %21, %25 : vector<128x128xi1>, vector<128x128xf32>
    %27 = vector.shape_cast %26 : vector<128x128xf32> to vector<1x128x128xf32>
    %cst_16 = arith.constant dense<0.000000e+00> : vector<1xf32>
    %28 = vector.multi_reduction <add>, %27, %cst_16 [1, 2] : vector<1x128x128xf32> to vector<1xf32>
    %29 = vector.shape_cast %28 : vector<1xf32> to vector<1x1x1xf32>
    %30 = vector.extract %29[0, 0, 0] : f32 from vector<1x1x1xf32>
    %31 = arith.mulf %26, %26 : vector<128x128xf32>
    %32 = vector.shape_cast %31 : vector<128x128xf32> to vector<1x128x128xf32>
    %cst_17 = arith.constant dense<0.000000e+00> : vector<1xf32>
    %33 = vector.multi_reduction <add>, %32, %cst_17 [1, 2] : vector<1x128x128xf32> to vector<1xf32>
    %34 = vector.shape_cast %33 : vector<1xf32> to vector<1x1x1xf32>
    %35 = vector.extract %34[0, 0, 0] : f32 from vector<1x1x1xf32>
    %cst_18 = arith.constant 6.10351563E-5 : f32
    %36 = arith.mulf %30, %cst_18 : f32
    %cst_19 = arith.constant 6.10351563E-5 : f32
    %37 = arith.mulf %35, %cst_19 : f32
    %38 = arith.mulf %36, %36 : f32
    %39 = arith.subf %37, %38 : f32
    %cst_20 = arith.constant 0.000000e+00 : f32
    %40 = arith.maximumf %39, %cst_20 : f32
    %cst_21 = arith.constant 9.99999993E-9 : f32
    %41 = arith.addf %40, %cst_21 : f32
    %42 = math.rsqrt %41 : f32
    %43 = vector.broadcast %42 : f32 to vector<128x1xf32>
    %44 = arith.mulf %43, %2 : vector<128x1xf32>
    %45 = vector.broadcast %36 : f32 to vector<128x1xf32>
    %46 = arith.mulf %45, %44 : vector<128x1xf32>
    %47 = arith.subf %3, %46 : vector<128x1xf32>
    %48 = vector.broadcast %44 : vector<128x1xf32> to vector<128x128xf32>
    %49 = arith.mulf %26, %48 : vector<128x128xf32>
    %50 = vector.broadcast %47 : vector<128x1xf32> to vector<128x128xf32>
    %51 = arith.addf %49, %50 : vector<128x128xf32>
    %c0_22 = arith.constant 0 : index
    %c128 = arith.constant 128 : index
    %52 = vector.load %arg8[%c0_22, %c128] : memref<128x384xf32, #tpu.memory_space<vmem>>, vector<128x128xf32>
    tpu.vector_store %arg8[%c0_22, %c128], %51 {strides = array<i32>} : memref<128x384xf32, #tpu.memory_space<vmem>>, vector<128x128xf32>,
    %c0_23 = arith.constant 0 : index
    %c0_24 = arith.constant 0 : index
    %53 = vector.load %arg8[%c0_23, %c0_24] : memref<128x384xf32, #tpu.memory_space<vmem>>, vector<128x384xf32>
    %54 = vector.extract_strided_slice %9 {offsets = [0, 0], sizes = [128, 1], strides = [1, 1]} : vector<128x3xf32> to vector<128x1xf32>
    %55 = vector.extract_strided_slice %53 {offsets = [0, 126], sizes = [128, 128], strides = [1, 1]} : vector<128x384xf32> to vector<128x128xf32>
    %56 = vector.broadcast %54 : vector<128x1xf32> to vector<128x128xf32>
    %57 = arith.mulf %56, %55 : vector<128x128xf32>
    %58 = vector.broadcast %4 : vector<128x1xf32> to vector<128x128xf32>
    %59 = arith.addf %58, %57 : vector<128x128xf32>
    %60 = vector.extract_strided_slice %9 {offsets = [0, 1], sizes = [128, 1], strides = [1, 1]} : vector<128x3xf32> to vector<128x1xf32>
    %61 = vector.extract_strided_slice %53 {offsets = [0, 128], sizes = [128, 128], strides = [1, 1]} : vector<128x384xf32> to vector<128x128xf32>
    %62 = vector.broadcast %60 : vector<128x1xf32> to vector<128x128xf32>
    %63 = arith.mulf %62, %61 : vector<128x128xf32>
    %64 = arith.addf %59, %63 : vector<128x128xf32>
    %65 = vector.extract_strided_slice %9 {offsets = [0, 2], sizes = [128, 1], strides = [1, 1]} : vector<128x3xf32> to vector<128x1xf32>
    %66 = vector.extract_strided_slice %53 {offsets = [0, 130], sizes = [128, 128], strides = [1, 1]} : vector<128x384xf32> to vector<128x128xf32>
    %67 = vector.broadcast %65 : vector<128x1xf32> to vector<128x128xf32>
    %68 = arith.mulf %67, %66 : vector<128x128xf32>
    %69 = arith.addf %64, %68 : vector<128x128xf32>
    %cst_25 = arith.constant 0.000000e+00 : f32
    %70 = vector.broadcast %cst_25 : f32 to vector<128x128xf32>
    %71 = arith.cmpf oge, %69, %70 : vector<128x128xf32>
    %72 = vector.broadcast %8 : vector<128x1xf32> to vector<128x128xf32>
    %73 = arith.mulf %72, %69 : vector<128x128xf32>
    %74 = arith.select %71, %69, %73 : vector<128x128xi1>, vector<128x128xf32>
    %75 = vector.shape_cast %74 : vector<128x128xf32> to vector<1x128x128xf32>
    %cst_26 = arith.constant dense<0.000000e+00> : vector<1xf32>
    %76 = vector.multi_reduction <add>, %75, %cst_26 [1, 2] : vector<1x128x128xf32> to vector<1xf32>
    %77 = vector.shape_cast %76 : vector<1xf32> to vector<1x1x1xf32>
    %78 = vector.extract %77[0, 0, 0] : f32 from vector<1x1x1xf32>
    %79 = arith.mulf %74, %74 : vector<128x128xf32>
    %80 = vector.shape_cast %79 : vector<128x128xf32> to vector<1x128x128xf32>
    %cst_27 = arith.constant dense<0.000000e+00> : vector<1xf32>
    %81 = vector.multi_reduction <add>, %80, %cst_27 [1, 2] : vector<1x128x128xf32> to vector<1xf32>
    %82 = vector.shape_cast %81 : vector<1xf32> to vector<1x1x1xf32>
    %83 = vector.extract %82[0, 0, 0] : f32 from vector<1x1x1xf32>
    %cst_28 = arith.constant 6.10351563E-5 : f32
    %84 = arith.mulf %78, %cst_28 : f32
    %cst_29 = arith.constant 6.10351563E-5 : f32
    %85 = arith.mulf %83, %cst_29 : f32
    %86 = arith.mulf %84, %84 : f32
    %87 = arith.subf %85, %86 : f32
    %cst_30 = arith.constant 0.000000e+00 : f32
    %88 = arith.maximumf %87, %cst_30 : f32
    %cst_31 = arith.constant 9.99999993E-9 : f32
    %89 = arith.addf %88, %cst_31 : f32
    %90 = math.rsqrt %89 : f32
    %91 = vector.broadcast %90 : f32 to vector<128x1xf32>
    %92 = arith.mulf %91, %5 : vector<128x1xf32>
    %93 = vector.broadcast %84 : f32 to vector<128x1xf32>
    %94 = arith.mulf %93, %92 : vector<128x1xf32>
    %95 = arith.subf %6, %94 : vector<128x1xf32>
    %96 = vector.broadcast %92 : vector<128x1xf32> to vector<128x128xf32>
    %97 = arith.mulf %74, %96 : vector<128x128xf32>
    %98 = vector.broadcast %95 : vector<128x1xf32> to vector<128x128xf32>
    %99 = arith.addf %97, %98 : vector<128x128xf32>
    %cst_32 = arith.constant dense<0.000000e+00> : vector<128x128xf32>
    %100 = tpu.matmul %11, %99, %cst_32 {dimension_numbers = #tpu.dot_dimension_numbers<[1], [0], [0], [1], [0, 0, 1, 1], [], []>} : vector<128x128xf32>, vector<128x128xf32>, vector<128x128xf32> -> vector<128x128xf32>
    %101 = vector.broadcast %12 : vector<128x1xf32> to vector<128x128xf32>
    %102 = arith.addf %100, %101 : vector<128x128xf32>
    %103 = vector.extract_strided_slice %102 {offsets = [0, 0], sizes = [64, 128], strides = [1, 1]} : vector<128x128xf32> to vector<64x128xf32>
    %c0_33 = arith.constant 0 : index
    %c0_34 = arith.constant 0 : index
    %c0_35 = arith.constant 0 : index
    %104 = vector.load %arg6[%c0_33, %c0_34, %c0_35] : memref<1x64x128xf32, #tpu.memory_space<vmem>>, vector<1x64x128xf32>
    %105 = vector.shape_cast %104 : vector<1x64x128xf32> to vector<64x128xf32>
    %106 = vector.shape_cast %103 : vector<64x128xf32> to vector<1x64x128xf32>
    tpu.vector_store %arg6[%c0_33, %c0_34, %c0_35], %106 {strides = array<i32>} : memref<1x64x128xf32, #tpu.memory_space<vmem>>, vector<1x64x128xf32>,
    %107 = vector.extract_strided_slice %102 {offsets = [64, 0], sizes = [64, 128], strides = [1, 1]} : vector<128x128xf32> to vector<64x128xf32>
    %c0_36 = arith.constant 0 : index
    %c0_37 = arith.constant 0 : index
    %c0_38 = arith.constant 0 : index
    %108 = vector.load %arg7[%c0_36, %c0_37, %c0_38] : memref<1x64x128xf32, #tpu.memory_space<vmem>>, vector<1x64x128xf32>
    %109 = vector.shape_cast %108 : vector<1x64x128xf32> to vector<64x128xf32>
    %110 = vector.shape_cast %107 : vector<64x128xf32> to vector<1x64x128xf32>
    tpu.vector_store %arg7[%c0_36, %c0_37, %c0_38], %110 {strides = array<i32>} : memref<1x64x128xf32, #tpu.memory_space<vmem>>, vector<1x64x128xf32>,
    return
  }
  func.func @transform_0(%arg0: i32) -> (i32, i32, i32) {
    %c0_i32 = arith.constant 0 : i32
    %c0_i32_0 = arith.constant 0 : i32
    %c0_i32_1 = arith.constant 0 : i32
    return %arg0, %c0_i32, %c0_i32_0 : i32, i32, i32
  }
  func.func @transform_1(%arg0: i32) -> (i32, i32) {
    %c0_i32 = arith.constant 0 : i32
    %c0_i32_0 = arith.constant 0 : i32
    %c0_i32_1 = arith.constant 0 : i32
    return %c0_i32, %c0_i32_0 : i32, i32
  }
  func.func @transform_2(%arg0: i32) -> (i32, i32) {
    %c0_i32 = arith.constant 0 : i32
    %c0_i32_0 = arith.constant 0 : i32
    %c0_i32_1 = arith.constant 0 : i32
    return %c0_i32, %c0_i32_0 : i32, i32
  }
  func.func @transform_3(%arg0: i32) -> (i32, i32) {
    %c0_i32 = arith.constant 0 : i32
    %c0_i32_0 = arith.constant 0 : i32
    %c0_i32_1 = arith.constant 0 : i32
    return %c0_i32, %c0_i32_0 : i32, i32
  }
  func.func @transform_4(%arg0: i32) -> (i32, i32) {
    %c0_i32 = arith.constant 0 : i32
    %c0_i32_0 = arith.constant 0 : i32
    %c0_i32_1 = arith.constant 0 : i32
    return %c0_i32, %c0_i32_0 : i32, i32
  }
  func.func @transform_5(%arg0: i32) -> (i32, i32, i32) {
    %c0_i32 = arith.constant 0 : i32
    %c0_i32_0 = arith.constant 0 : i32
    %c0_i32_1 = arith.constant 0 : i32
    return %arg0, %c0_i32, %c0_i32_0 : i32, i32, i32
  }
  func.func @transform_6(%arg0: i32) -> (i32, i32, i32) {
    %c0_i32 = arith.constant 0 : i32
    %c0_i32_0 = arith.constant 0 : i32
    %c0_i32_1 = arith.constant 0 : i32
    return %arg0, %c0_i32, %c0_i32_0 : i32, i32, i32
  }
}

</mosaic_0001>

<llo_original>
// kernel: tpu_custom_call.1
$region0: #{tpu_custom_call.1}
  #allocation0 [shape = 'u32[]', space=smem, size = 0x4, offset = 0x4, fixed_abs, tag = 'smem constant byte address 0x4 - core index']
  #allocation1 [shape = 'u32[144,128]{1,0:T(1,128)}', space=vmem, size = 0x12000, scoped, tag = 'internal scratch']
  #allocation2 [shape = 'f32[128,384]{1,0:T(8,128)}', space=vmem, size = 0x30000, scoped, tag = 'scratch operand']
  %s0 = inlined_call_operand.vmem [shape: bf16[2,64,128], index: 0, kind: input, shape index: {}]
  %s1 = inlined_call_operand.vmem [shape: bf16[128,64], index: 1, kind: input, shape index: {}]
  %s2 = inlined_call_operand.vmem [shape: f32[128,11], index: 2, kind: input, shape index: {}]
  %s3 = inlined_call_operand.vmem [shape: f32[128,128], index: 3, kind: input, shape index: {}]
  %s4 = inlined_call_operand.vmem [shape: f32[128,1], index: 4, kind: input, shape index: {}]
  %s5 = inlined_call_operand.hbm [shape: f32[2,64,128], index: 5, kind: output, shape index: {0}]
  %s6 = inlined_call_operand.hbm [shape: f32[2,64,128], index: 6, kind: output, shape index: {1}]
  %7 = xla_tuple %s5, %s6
  %s8 = sld [smem:[#allocation0]]
  $region61: #{tpu_custom_call.1} parent=0
    _
  %s10 = ssub.s32 1, %s8
  %s11 = scalar_select 0, %s10, %s8
  $region1: #{tpu_custom_call.1} parent=0
    #allocation3 [shape = 'u8[65536]{0}', space=vmem, size = 0x10000, scoped, tag = 'output window, operand 0']
    #allocation4 [shape = 's32[2]{0}', space=sflag, size = 0x8, scoped, tag = 'scoped memory for tpu_custom_call.1']
    #allocation5 [shape = 'u8[65536]{0}', space=vmem, size = 0x10000, scoped, tag = 'output window, operand 1']
    #allocation6 [shape = 's32[2]{0}', space=sflag, size = 0x8, scoped, tag = 'scoped memory for tpu_custom_call.1']
    %12 = vsyncpa [#allocation4], 0
    %s13 = scalar_lea.sflag [#allocation4], 1
    %14 = vsyncpa %s13, 0
    %15 = vsyncpa [#allocation6], 0
    %s16 = scalar_lea.sflag [#allocation6], 1
    %17 = vsyncpa %s16, 0
    loop: start=0, step=1, limit=4
    $region2: #{tpu_custom_call.1} parent=1 // loop_pre_header
      _
    $region3: #{tpu_custom_call.1} parent=1 // loop_header
      %s19 = sphi 0, %s23
      %p20 = scmp.ge.s32.totalorder %s19, 4
      %s29 = sphi 0, %s31
      %s32 = sphi 0, %s29
      %s33 = sphi 0, %s32
      %s49 = sphi 0, %s33
      %s53 = sphi 0, %s53
      %s55 = sphi 0, %s53
      %s56 = sphi 0, %s55
      %s70 = sphi 0, %s56
      %s74 = sphi 0, %s74
      %s76 = sphi 0, %s74
      %s77 = sphi 0, %s76
      %s91 = sphi 0, %s77
      %s95 = sphi 0, %s95
      %s97 = sphi 0, %s95
      %s98 = sphi 0, %s97
      %s112 = sphi 0, %s98
      %s116 = sphi 0, %s116
      %s118 = sphi 0, %s116
      %s119 = sphi 0, %s118
      %s133 = sphi 0, %s119
      %s139 = sphi 0, %s141
      %s142 = sphi 0, %s139
      %s143 = sphi 0, %s142
      %s159 = sphi 0, %s143
      %s165 = sphi 0, %s167
      %s168 = sphi 0, %s165
      %s169 = sphi 0, %s168
      %s185 = sphi 0, %s169
    $region4: #{tpu_custom_call.1} parent=1 // loop_header_branch
      %22 = sbr.rel (%p20) target = $region8
    $region5: #{tpu_custom_call.1} parent=1 // loop_body
      %s24 = ssub.s32 %s19, 1
      %s25 = ssub.s32 %s19, 2
      %s26 = sadd.s32 %s19, 1
      %s27 = ssub.s32 %s19, %s26
      %p28 = scmp.eq.s32.totalorder %s27, 0
      %s30 = sadd.s32 %s29, 1
      %s31 = scalar_select %p28, %s29, %s30
      %p34 = pneg %p28
      %p35 = scmp.eq.s32.totalorder %s19, 1
      %p36 = por %p34, %p35
      %p37 = scmp.ne.s32.totalorder %s29, %s32
      %p38 = scmp.eq.s32.totalorder %s19, 0
      %p39 = por %p37, %p38
      %p40 = scmp.ne.s32.totalorder %s29, %s32
      %p41 = scmp.eq.s32.totalorder %s24, 1
      %p42 = por %p40, %p41
      %p43 = scmp.ne.s32.totalorder %s32, %s33
      %p44 = scmp.eq.s32.totalorder %s24, 0
      %p45 = por %p43, %p44
      %p46 = scmp.ne.s32.totalorder %s32, %s33
      %p47 = scmp.eq.s32.totalorder %s25, 1
      %p48 = por %p46, %p47
      %p50 = scmp.ne.s32.totalorder %s33, %s49
      %p51 = scmp.eq.s32.totalorder %s25, 0
      %p52 = por %p50, %p51
      %s54 = sadd.s32 %s53, 1
      %p57 = scmp.eq.s32.totalorder %s19, 1
      %p58 = scmp.ne.s32.totalorder %s53, %s55
      %p59 = scmp.eq.s32.totalorder %s19, 0
      %p60 = por %p58, %p59
      %p61 = scmp.ne.s32.totalorder %s53, %s55
      %p62 = scmp.eq.s32.totalorder %s24, 1
      %p63 = por %p61, %p62
      %p64 = scmp.ne.s32.totalorder %s55, %s56
      %p65 = scmp.eq.s32.totalorder %s24, 0
      %p66 = por %p64, %p65
      %p67 = scmp.ne.s32.totalorder %s55, %s56
      %p68 = scmp.eq.s32.totalorder %s25, 1
      %p69 = por %p67, %p68
      %p71 = scmp.ne.s32.totalorder %s56, %s70
      %p72 = scmp.eq.s32.totalorder %s25, 0
      %p73 = por %p71, %p72
      %s75 = sadd.s32 %s74, 1
      %p78 = scmp.eq.s32.totalorder %s19, 1
      %p79 = scmp.ne.s32.totalorder %s74, %s76
      %p80 = scmp.eq.s32.totalorder %s19, 0
      %p81 = por %p79, %p80
      %p82 = scmp.ne.s32.totalorder %s74, %s76
      %p83 = scmp.eq.s32.totalorder %s24, 1
      %p84 = por %p82, %p83
      %p85 = scmp.ne.s32.totalorder %s76, %s77
      %p86 = scmp.eq.s32.totalorder %s24, 0
      %p87 = por %p85, %p86
      %p88 = scmp.ne.s32.totalorder %s76, %s77
      %p89 = scmp.eq.s32.totalorder %s25, 1
      %p90 = por %p88, %p89
      %p92 = scmp.ne.s32.totalorder %s77, %s91
      %p93 = scmp.eq.s32.totalorder %s25, 0
      %p94 = por %p92, %p93
      %s96 = sadd.s32 %s95, 1
      %p99 = scmp.eq.s32.totalorder %s19, 1
      %p100 = scmp.ne.s32.totalorder %s95, %s97
      %p101 = scmp.eq.s32.totalorder %s19, 0
      %p102 = por %p100, %p101
      %p103 = scmp.ne.s32.totalorder %s95, %s97
      %p104 = scmp.eq.s32.totalorder %s24, 1
      %p105 = por %p103, %p104
      %p106 = scmp.ne.s32.totalorder %s97, %s98
      %p107 = scmp.eq.s32.totalorder %s24, 0
      %p108 = por %p106, %p107
      %p109 = scmp.ne.s32.totalorder %s97, %s98
      %p110 = scmp.eq.s32.totalorder %s25, 1
      %p111 = por %p109, %p110
      %p113 = scmp.ne.s32.totalorder %s98, %s112
      %p114 = scmp.eq.s32.totalorder %s25, 0
      %p115 = por %p113, %p114
      %s117 = sadd.s32 %s116, 1
      %p120 = scmp.eq.s32.totalorder %s19, 1
      %p121 = scmp.ne.s32.totalorder %s116, %s118
      %p122 = scmp.eq.s32.totalorder %s19, 0
      %p123 = por %p121, %p122
      %p124 = scmp.ne.s32.totalorder %s116, %s118
      %p125 = scmp.eq.s32.totalorder %s24, 1
      %p126 = por %p124, %p125
      %p127 = scmp.ne.s32.totalorder %s118, %s119
      %p128 = scmp.eq.s32.totalorder %s24, 0
      %p129 = por %p127, %p128
      %p130 = scmp.ne.s32.totalorder %s118, %s119
      %p131 = scmp.eq.s32.totalorder %s25, 1
      %p132 = por %p130, %p131
      %p134 = scmp.ne.s32.totalorder %s119, %s133
      %p135 = scmp.eq.s32.totalorder %s25, 0
      %p136 = por %p134, %p135
      %s137 = ssub.s32 %s19, %s26
      %p138 = scmp.eq.s32.totalorder %s137, 0
      %s140 = sadd.s32 %s139, 1
      %s141 = scalar_select %p138, %s139, %s140
      %p144 = pneg %p138
      %p145 = scmp.eq.s32.totalorder %s19, 1
      %p146 = por %p144, %p145
      %p147 = scmp.ne.s32.totalorder %s139, %s142
      %p148 = scmp.eq.s32.totalorder %s19, 0
      %p149 = por %p147, %p148
      %p150 = scmp.ne.s32.totalorder %s139, %s142
      %p151 = scmp.eq.s32.totalorder %s24, 1
      %p152 = por %p150, %p151
      %p153 = scmp.ne.s32.totalorder %s142, %s143
      %p154 = scmp.eq.s32.totalorder %s24, 0
      %p155 = por %p153, %p154
      %p156 = scmp.ne.s32.totalorder %s142, %s143
      %p157 = scmp.eq.s32.totalorder %s25, 1
      %p158 = por %p156, %p157
      %p160 = scmp.ne.s32.totalorder %s143, %s159
      %p161 = scmp.eq.s32.totalorder %s25, 0
      %p162 = por %p160, %p161
      %s163 = ssub.s32 %s19, %s26
      %p164 = scmp.eq.s32.totalorder %s163, 0
      %s166 = sadd.s32 %s165, 1
      %s167 = scalar_select %p164, %s165, %s166
      %p170 = pneg %p164
      %p171 = scmp.eq.s32.totalorder %s19, 1
      %p172 = por %p170, %p171
      %p173 = scmp.ne.s32.totalorder %s165, %s168
      %p174 = scmp.eq.s32.totalorder %s19, 0
      %p175 = por %p173, %p174
      %p176 = scmp.ne.s32.totalorder %s165, %s168
      %p177 = scmp.eq.s32.totalorder %s24, 1
      %p178 = por %p176, %p177
      %p179 = scmp.ne.s32.totalorder %s168, %s169
      %p180 = scmp.eq.s32.totalorder %s24, 0
      %p181 = por %p179, %p180
      %p182 = scmp.ne.s32.totalorder %s168, %s169
      %p183 = scmp.eq.s32.totalorder %s25, 1
      %p184 = por %p182, %p183
      %p186 = scmp.ne.s32.totalorder %s169, %s185
      %p187 = scmp.eq.s32.totalorder %s25, 0
      %p188 = por %p186, %p187
      %p189 = scmp.le.s32.totalorder 1, %s19
      %p190 = scmp.lt.s32.totalorder %s19, 3
      %p191 = pnand %p189, %p190
      %p192 = pneg %p191
      // Predicated region
      $region9: #{tpu_custom_call.1} parent=5 // pred_check
        _
      $region10: #{tpu_custom_call.1} parent=5 // pred_check_branch
        %194 = sbr.rel (%p191) target = $region12
      $region11: #{tpu_custom_call.1} parent=5 // pred_region
        %s195 = ssub.s32 %s19, 1
        // Predicated region
        $region13: #{tpu_custom_call.1} parent=11 // pred_check
          %p196 = pneg %p66
        $region14: #{tpu_custom_call.1} parent=11 // pred_check_branch
          %198 = sbr.rel (%p196) target = $region16
        $region15: #{tpu_custom_call.1} parent=11 // pred_region
          _
        $region16: #{tpu_custom_call.1} parent=11 // pred_fallthru
          _
        // Predicated region
        $region17: #{tpu_custom_call.1} parent=11 // pred_check
          %p199 = pneg %p87
        $region18: #{tpu_custom_call.1} parent=11 // pred_check_branch
          %201 = sbr.rel (%p199) target = $region20
        $region19: #{tpu_custom_call.1} parent=11 // pred_region
          _
        $region20: #{tpu_custom_call.1} parent=11 // pred_fallthru
          _
        // Predicated region
        $region21: #{tpu_custom_call.1} parent=11 // pred_check
          %p202 = pneg %p108
        $region22: #{tpu_custom_call.1} parent=11 // pred_check_branch
          %204 = sbr.rel (%p202) target = $region24
        $region23: #{tpu_custom_call.1} parent=11 // pred_region
          _
        $region24: #{tpu_custom_call.1} parent=11 // pred_fallthru
          _
        // Predicated region
        $region25: #{tpu_custom_call.1} parent=11 // pred_check
          %p205 = pneg %p129
        $region26: #{tpu_custom_call.1} parent=11 // pred_check_branch
          %207 = sbr.rel (%p205) target = $region28
        $region27: #{tpu_custom_call.1} parent=11 // pred_region
          _
        $region28: #{tpu_custom_call.1} parent=11 // pred_fallthru
          _
      $region12: #{tpu_custom_call.1} parent=5 // pred_fallthru
        _
      %p208 = scmp.lt.s32.totalorder %s19, 2
      // Predicated region
      $region29: #{tpu_custom_call.1} parent=5 // pred_check
        %p209 = pneg %p208
      $region30: #{tpu_custom_call.1} parent=5 // pred_check_branch
        %211 = sbr.rel (%p209) target = $region32
      $region31: #{tpu_custom_call.1} parent=5 // pred_region
        // Predicated region
        $region33: #{tpu_custom_call.1} parent=31 // pred_check
          %p212 = pneg %p39
        $region34: #{tpu_custom_call.1} parent=31 // pred_check_branch
          %214 = sbr.rel (%p212) target = $region36
        $region35: #{tpu_custom_call.1} parent=31 // pred_region
          %p215 = scmp.lt.s32.totalorder %s19, 1
          %s216 = scalar_select %p215, %s19, 1
          %s217 = smul.addr %s216, 8
          %s218 = smul.addr %s217, 4
          %s219 = scalar_lea.vmem %s0, %s218
        $region36: #{tpu_custom_call.1} parent=31 // pred_fallthru
          _
      $region32: #{tpu_custom_call.1} parent=5 // pred_fallthru
        _
      %p220 = scmp.le.s32.totalorder 1, %s19
      %p221 = scmp.lt.s32.totalorder %s19, 3
      %p222 = pnand %p220, %p221
      %p223 = pneg %p222
      // Predicated region
      $region37: #{tpu_custom_call.1} parent=5 // pred_check
        _
      $region38: #{tpu_custom_call.1} parent=5 // pred_check_branch
        %225 = sbr.rel (%p222) target = $region40
      $region39: #{tpu_custom_call.1} parent=5 // pred_region
        %s226 = ssub.s32 %s19, 1
        %p227 = scmp.lt.s32.totalorder %s24, 1
        %s228 = scalar_select %p227, %s24, 1
        %s229 = smul.addr %s228, 8
        %s230 = smul.addr %s229, 4
        %s231 = scalar_lea.vmem %s0, %s230
        %p232 = pneg %p45
        %p233 = pneg %p42
        %p234 = pneg %p66
        %p235 = pneg %p63
        %p236 = pneg %p87
        %p237 = pneg %p84
        %p238 = pneg %p108
        %p239 = pneg %p105
        %p240 = pneg %p129
        %p241 = pneg %p126
        %p242 = pneg %p155
        %p243 = pneg %p152
        %s244 = sand.u32 %s142, 1
        %s245 = scalar_lea.sflag [#allocation4], %s244
        %s246 = sand.u32 %s142, 1
        %s247 = smul.addr %s246, 64
        %s248 = scalar_lea.vmem [#allocation3], %s247
        %p249 = pneg %p181
        %p250 = pneg %p178
        %s251 = sand.u32 %s168, 1
        %s252 = scalar_lea.sflag [#allocation6], %s251
        %s253 = sand.u32 %s168, 1
        %s254 = smul.addr %s253, 64
        %s255 = scalar_lea.vmem [#allocation5], %s254
        %p256 = scmp.lt.s32.totalorder %s24, 1
        %s257 = scalar_select %p256, %s24, 1
        %s258 = smul.addr %s257, 8
        %s259 = smul.addr %s258, 4
        %s260 = scalar_lea.vmem %s0, %s259
        %v262 = vld [vmem:[%s2] sm:$0xff]
        %v263 = vld [vmem:[%s2 + $0x8] sm:$0xff]
        %v264 = vld [vmem:[%s2 + $0x10] sm:$0xff]
        %v265 = vld [vmem:[%s2 + $0x18] sm:$0xff]
        %v266 = vld [vmem:[%s2 + $0x20] sm:$0xff]
        %v267 = vld [vmem:[%s2 + $0x28] sm:$0xff]
        %v268 = vld [vmem:[%s2 + $0x30] sm:$0xff]
        %v269 = vld [vmem:[%s2 + $0x38] sm:$0xff]
        %v270 = vld [vmem:[%s2 + $0x40] sm:$0xff]
        %v271 = vld [vmem:[%s2 + $0x48] sm:$0xff]
        %v272 = vld [vmem:[%s2 + $0x50] sm:$0xff]
        %v273 = vld [vmem:[%s2 + $0x58] sm:$0xff]
        %v274 = vld [vmem:[%s2 + $0x60] sm:$0xff]
        %v275 = vld [vmem:[%s2 + $0x68] sm:$0xff]
        %v276 = vld [vmem:[%s2 + $0x70] sm:$0xff]
        %v277 = vld [vmem:[%s2 + $0x78] sm:$0xff]
        %v278 = vld [vmem:[%s1] sm:$0xf]
        %v279 = vld [vmem:[%s1 + $0x4] sm:$0xf]
        %v280 = vld [vmem:[%s1 + $0x8] sm:$0xf]
        %v281 = vld [vmem:[%s1 + $0xc] sm:$0xf]
        %v282 = vld [vmem:[%s1 + $0x10] sm:$0xf]
        %v283 = vld [vmem:[%s1 + $0x14] sm:$0xf]
        %v284 = vld [vmem:[%s1 + $0x18] sm:$0xf]
        %v285 = vld [vmem:[%s1 + $0x1c] sm:$0xf]
        %v286 = vld [vmem:[%s1 + $0x20] sm:$0xf]
        %v287 = vld [vmem:[%s1 + $0x24] sm:$0xf]
        %v288 = vld [vmem:[%s1 + $0x28] sm:$0xf]
        %v289 = vld [vmem:[%s1 + $0x2c] sm:$0xf]
        %v290 = vld [vmem:[%s1 + $0x30] sm:$0xf]
        %v291 = vld [vmem:[%s1 + $0x34] sm:$0xf]
        %v292 = vld [vmem:[%s1 + $0x38] sm:$0xf]
        %v293 = vld [vmem:[%s1 + $0x3c] sm:$0xf]
        %v294 = vld [vmem:[%s3] sm:$0xff]
        %v295 = vld [vmem:[%s3 + $0x8] sm:$0xff]
        %v296 = vld [vmem:[%s3 + $0x10] sm:$0xff]
        %v297 = vld [vmem:[%s3 + $0x18] sm:$0xff]
        %v298 = vld [vmem:[%s3 + $0x20] sm:$0xff]
        %v299 = vld [vmem:[%s3 + $0x28] sm:$0xff]
        %v300 = vld [vmem:[%s3 + $0x30] sm:$0xff]
        %v301 = vld [vmem:[%s3 + $0x38] sm:$0xff]
        %v302 = vld [vmem:[%s3 + $0x40] sm:$0xff]
        %v303 = vld [vmem:[%s3 + $0x48] sm:$0xff]
        %v304 = vld [vmem:[%s3 + $0x50] sm:$0xff]
        %v305 = vld [vmem:[%s3 + $0x58] sm:$0xff]
        %v306 = vld [vmem:[%s3 + $0x60] sm:$0xff]
        %v307 = vld [vmem:[%s3 + $0x68] sm:$0xff]
        %v308 = vld [vmem:[%s3 + $0x70] sm:$0xff]
        %v309 = vld [vmem:[%s3 + $0x78] sm:$0xff]
        %v310 = vld [vmem:[%s4] sm:$0xff]
        %v311 = vld [vmem:[%s4 + $0x8] sm:$0xff]
        %v312 = vld [vmem:[%s4 + $0x10] sm:$0xff]
        %v313 = vld [vmem:[%s4 + $0x18] sm:$0xff]
        %v314 = vld [vmem:[%s4 + $0x20] sm:$0xff]
        %v315 = vld [vmem:[%s4 + $0x28] sm:$0xff]
        %v316 = vld [vmem:[%s4 + $0x30] sm:$0xff]
        %v317 = vld [vmem:[%s4 + $0x38] sm:$0xff]
        %v318 = vld [vmem:[%s4 + $0x40] sm:$0xff]
        %v319 = vld [vmem:[%s4 + $0x48] sm:$0xff]
        %v320 = vld [vmem:[%s4 + $0x50] sm:$0xff]
        %v321 = vld [vmem:[%s4 + $0x58] sm:$0xff]
        %v322 = vld [vmem:[%s4 + $0x60] sm:$0xff]
        %v323 = vld [vmem:[%s4 + $0x68] sm:$0xff]
        %v324 = vld [vmem:[%s4 + $0x70] sm:$0xff]
        %v325 = vld [vmem:[%s4 + $0x78] sm:$0xff]
        %326 = vst [vmem:[#allocation2] sm:$0xff] 0.0
        %327 = vst [vmem:[#allocation2 + $0x18] sm:$0xff] 0.0
        %328 = vst [vmem:[#allocation2 + $0x30] sm:$0xff] 0.0
        %329 = vst [vmem:[#allocation2 + $0x48] sm:$0xff] 0.0
        %330 = vst [vmem:[#allocation2 + $0x60] sm:$0xff] 0.0
        %331 = vst [vmem:[#allocation2 + $0x78] sm:$0xff] 0.0
        %332 = vst [vmem:[#allocation2 + $0x90] sm:$0xff] 0.0
        %333 = vst [vmem:[#allocation2 + $0xa8] sm:$0xff] 0.0
        %334 = vst [vmem:[#allocation2 + $0xc0] sm:$0xff] 0.0
        %335 = vst [vmem:[#allocation2 + $0xd8] sm:$0xff] 0.0
        %336 = vst [vmem:[#allocation2 + $0xf0] sm:$0xff] 0.0
        %337 = vst [vmem:[#allocation2 + $0x108] sm:$0xff] 0.0
        %338 = vst [vmem:[#allocation2 + $0x120] sm:$0xff] 0.0
        %339 = vst [vmem:[#allocation2 + $0x138] sm:$0xff] 0.0
        %340 = vst [vmem:[#allocation2 + $0x150] sm:$0xff] 0.0
        %341 = vst [vmem:[#allocation2 + $0x168] sm:$0xff] 0.0
        %342 = vst [vmem:[#allocation2 + $0x10] sm:$0xff] 0.0
        %343 = vst [vmem:[#allocation2 + $0x28] sm:$0xff] 0.0
        %344 = vst [vmem:[#allocation2 + $0x40] sm:$0xff] 0.0
        %345 = vst [vmem:[#allocation2 + $0x58] sm:$0xff] 0.0
        %346 = vst [vmem:[#allocation2 + $0x70] sm:$0xff] 0.0
        %347 = vst [vmem:[#allocation2 + $0x88] sm:$0xff] 0.0
        %348 = vst [vmem:[#allocation2 + $0xa0] sm:$0xff] 0.0
        %349 = vst [vmem:[#allocation2 + $0xb8] sm:$0xff] 0.0
        %350 = vst [vmem:[#allocation2 + $0xd0] sm:$0xff] 0.0
        %351 = vst [vmem:[#allocation2 + $0xe8] sm:$0xff] 0.0
        %352 = vst [vmem:[#allocation2 + $0x100] sm:$0xff] 0.0
        %353 = vst [vmem:[#allocation2 + $0x118] sm:$0xff] 0.0
        %354 = vst [vmem:[#allocation2 + $0x130] sm:$0xff] 0.0
        %355 = vst [vmem:[#allocation2 + $0x148] sm:$0xff] 0.0
        %356 = vst [vmem:[#allocation2 + $0x160] sm:$0xff] 0.0
        %357 = vst [vmem:[#allocation2 + $0x178] sm:$0xff] 0.0
        %v358 = vld [vmem:[%s260] sm:$0xf]
        %v359 = vld [vmem:[%s260 + $0x4] sm:$0xf]
        %v360 = vld [vmem:[%s260 + $0x8] sm:$0xf]
        %v361 = vld [vmem:[%s260 + $0xc] sm:$0xf]
        %v362 = vld [vmem:[%s260 + $0x10] sm:$0xf]
        %v363 = vld [vmem:[%s260 + $0x14] sm:$0xf]
        %v364 = vld [vmem:[%s260 + $0x18] sm:$0xf]
        %v365 = vld [vmem:[%s260 + $0x1c] sm:$0xf]
        %367 = vset.pattern.permute.xlu0 0
        %368 = vperm.xlu0 %367, %v262
        %v369 = vpop.permute.xlu0 %368
        %372 = vset.pattern.permute.xlu0 0
        %373 = vperm.xlu0 %372, %v263
        %v374 = vpop.permute.xlu0 %373
        %377 = vset.pattern.permute.xlu0 0
        %378 = vperm.xlu0 %377, %v264
        %v379 = vpop.permute.xlu0 %378
        %382 = vset.pattern.permute.xlu0 0
        %383 = vperm.xlu0 %382, %v265
        %v384 = vpop.permute.xlu0 %383
        %387 = vset.pattern.permute.xlu0 0
        %388 = vperm.xlu0 %387, %v266
        %v389 = vpop.permute.xlu0 %388
        %392 = vset.pattern.permute.xlu0 0
        %393 = vperm.xlu0 %392, %v267
        %v394 = vpop.permute.xlu0 %393
        %397 = vset.pattern.permute.xlu0 0
        %398 = vperm.xlu0 %397, %v268
        %v399 = vpop.permute.xlu0 %398
        %402 = vset.pattern.permute.xlu0 0
        %403 = vperm.xlu0 %402, %v269
        %v404 = vpop.permute.xlu0 %403
        %407 = vset.pattern.permute.xlu0 0
        %408 = vperm.xlu0 %407, %v270
        %v409 = vpop.permute.xlu0 %408
        %412 = vset.pattern.permute.xlu0 0
        %413 = vperm.xlu0 %412, %v271
        %v414 = vpop.permute.xlu0 %413
        %417 = vset.pattern.permute.xlu0 0
        %418 = vperm.xlu0 %417, %v272
        %v419 = vpop.permute.xlu0 %418
        %422 = vset.pattern.permute.xlu0 0
        %423 = vperm.xlu0 %422, %v273
        %v424 = vpop.permute.xlu0 %423
        %427 = vset.pattern.permute.xlu0 0
        %428 = vperm.xlu0 %427, %v274
        %v429 = vpop.permute.xlu0 %428
        %432 = vset.pattern.permute.xlu0 0
        %433 = vperm.xlu0 %432, %v275
        %v434 = vpop.permute.xlu0 %433
        %437 = vset.pattern.permute.xlu0 0
        %438 = vperm.xlu0 %437, %v276
        %v439 = vpop.permute.xlu0 %438
        %442 = vset.pattern.permute.xlu0 0
        %443 = vperm.xlu0 %442, %v277
        %v444 = vpop.permute.xlu0 %443
        %v462 = vunpack.c.l.b16 %v278
        %v463 = vunpack.c.l.b16 %v279
        %v464 = vunpack.c.l.b16 %v280
        %v465 = vunpack.c.l.b16 %v281
        %v466 = vunpack.c.l.b16 %v282
        %v467 = vunpack.c.l.b16 %v283
        %v468 = vunpack.c.l.b16 %v284
        %v469 = vunpack.c.l.b16 %v285
        %v470 = vunpack.c.l.b16 %v286
        %v471 = vunpack.c.l.b16 %v287
        %v472 = vunpack.c.l.b16 %v288
        %v473 = vunpack.c.l.b16 %v289
        %v474 = vunpack.c.l.b16 %v290
        %v475 = vunpack.c.l.b16 %v291
        %v476 = vunpack.c.l.b16 %v292
        %v477 = vunpack.c.l.b16 %v293
        %v478 = vpack.c.b16 %v463, %v462
        %v479 = vpack.c.b16 %v465, %v464
        %v480 = vpack.c.b16 %v467, %v466
        %v481 = vpack.c.b16 %v469, %v468
        %v482 = vpack.c.b16 %v471, %v470
        %v483 = vpack.c.b16 %v473, %v472
        %v484 = vpack.c.b16 %v475, %v474
        %v485 = vpack.c.b16 %v477, %v476
        %v494 = vunpack.c.l.b16 %v358
        %v495 = vunpack.c.l.b16 %v359
        %v496 = vunpack.c.l.b16 %v360
        %v497 = vunpack.c.l.b16 %v361
        %v498 = vunpack.c.l.b16 %v362
        %v499 = vunpack.c.l.b16 %v363
        %v500 = vunpack.c.l.b16 %v364
        %v501 = vunpack.c.l.b16 %v365
        %v502 = vpack.c.b16 %v495, %v494
        %v503 = vpack.c.b16 %v497, %v496
        %v504 = vpack.c.b16 %v499, %v498
        %v505 = vpack.c.b16 %v501, %v500
        %vm510 = vcmask 523264
        %v512 = vsel %vm510, %v478, 0
        %v515 = vsel %vm510, %v479, 0
        %v518 = vsel %vm510, %v480, 0
        %v521 = vsel %vm510, %v481, 0
        %v524 = vsel %vm510, %v482, 0
        %v527 = vsel %vm510, %v483, 0
        %v530 = vsel %vm510, %v484, 0
        %v533 = vsel %vm510, %v485, 0
        %535 = vmatprep.subr.bf16.mxu0 0
        %536 = vmatpush1.bf16.msra.mxu0 0
        %537 = vmatprep.subr.bf16.mxu0 0
        %538 = vmatpush1.bf16.msra.mxu0 0
        %539 = vmatprep.subr.bf16.mxu0 0
        %540 = vmatpush1.bf16.msra.mxu0 0
        %541 = vmatprep.subr.bf16.mxu0 0
        %542 = vmatpush1.bf16.msra.mxu0 0
        %543 = vmatprep.subr.bf16.mxu0 0
        %544 = vmatpush1.bf16.msra.mxu0 %v505
        %545 = vmatprep.subr.bf16.mxu0 0
        %546 = vmatpush1.bf16.msra.mxu0 %v504
        %547 = vmatprep.subr.bf16.mxu0 0
        %548 = vmatpush1.bf16.msra.mxu0 %v503
        %549 = vmatprep.subr.bf16.mxu0 0
        %550 = vmatpush1.bf16.msra.mxu0 %v502
        %551 = vmatprep.subr.bf16.mxu0 0
        %552 = vmatpush2.bf16.msra.mxu0 0
        %553 = vmatprep.subr.bf16.mxu0 0
        %554 = vmatpush2.bf16.msra.mxu0 0
        %555 = vmatprep.subr.bf16.mxu0 0
        %556 = vmatpush2.bf16.msra.mxu0 0
        %557 = vmatprep.subr.bf16.mxu0 0
        %558 = vmatpush2.bf16.msra.mxu0 0
        %559 = vmatprep.subr.bf16.mxu0 0
        %560 = vmatpush2.bf16.msra.mxu0 0
        %561 = vmatprep.subr.bf16.mxu0 0
        %562 = vmatpush2.bf16.msra.mxu0 0
        %563 = vmatprep.subr.bf16.mxu0 0
        %564 = vmatpush2.bf16.msra.mxu0 0
        %565 = vmatprep.subr.bf16.mxu0 0
        %566 = vmatpush2.bf16.msra.mxu0 0
        %567 = vmatprep.mubr.bf16.mxu0 0
        %568 = vmatmul.mubr.bf16.gmra.mxu0 %v512
        %v569 = vpop.f32.mrf.mxu0
        %v570 = vadd.f32 %v369, %v569
        %v571 = vpop.f32.mrf.mxu0
        %v572 = vpop.f32.mrf.mxu0
        %v573 = vadd.f32 %v374, %v572
        %v574 = vpop.f32.mrf.mxu0
        %575 = vmatprep.mubr.bf16.mxu0 0
        %576 = vmatmul.mubr.bf16.gmra.mxu0 %v515
        %v577 = vpop.f32.mrf.mxu0
        %v578 = vadd.f32 %v379, %v577
        %v579 = vpop.f32.mrf.mxu0
        %v580 = vpop.f32.mrf.mxu0
        %v581 = vadd.f32 %v384, %v580
        %v582 = vpop.f32.mrf.mxu0
        %583 = vmatprep.mubr.bf16.mxu0 0
        %584 = vmatmul.mubr.bf16.gmra.mxu0 %v518
        %v585 = vpop.f32.mrf.mxu0
        %v586 = vadd.f32 %v389, %v585
        %v587 = vpop.f32.mrf.mxu0
        %v588 = vpop.f32.mrf.mxu0
        %v589 = vadd.f32 %v394, %v588
        %v590 = vpop.f32.mrf.mxu0
        %591 = vmatprep.mubr.bf16.mxu0 0
        %592 = vmatmul.mubr.bf16.gmra.mxu0 %v521
        %v593 = vpop.f32.mrf.mxu0
        %v594 = vadd.f32 %v399, %v593
        %v595 = vpop.f32.mrf.mxu0
        %v596 = vpop.f32.mrf.mxu0
        %v597 = vadd.f32 %v404, %v596
        %v598 = vpop.f32.mrf.mxu0
        %599 = vmatprep.mubr.bf16.mxu0 0
        %600 = vmatmul.mubr.bf16.gmra.mxu0 %v524
        %v601 = vpop.f32.mrf.mxu0
        %v602 = vadd.f32 %v409, %v601
        %v603 = vpop.f32.mrf.mxu0
        %v604 = vpop.f32.mrf.mxu0
        %v605 = vadd.f32 %v414, %v604
        %v606 = vpop.f32.mrf.mxu0
        %607 = vmatprep.mubr.bf16.mxu0 0
        %608 = vmatmul.mubr.bf16.gmra.mxu0 %v527
        %v609 = vpop.f32.mrf.mxu0
        %v610 = vadd.f32 %v419, %v609
        %v611 = vpop.f32.mrf.mxu0
        %v612 = vpop.f32.mrf.mxu0
        %v613 = vadd.f32 %v424, %v612
        %v614 = vpop.f32.mrf.mxu0
        %615 = vmatprep.mubr.bf16.mxu0 0
        %616 = vmatmul.mubr.bf16.gmra.mxu0 %v530
        %v617 = vpop.f32.mrf.mxu0
        %v618 = vadd.f32 %v429, %v617
        %v619 = vpop.f32.mrf.mxu0
        %v620 = vpop.f32.mrf.mxu0
        %v621 = vadd.f32 %v434, %v620
        %v622 = vpop.f32.mrf.mxu0
        %623 = vmatprep.mubr.bf16.mxu0 0
        %624 = vmatmul.mubr.bf16.gmra.mxu0 %v533
        %v625 = vpop.f32.mrf.mxu0
        %v626 = vadd.f32 %v439, %v625
        %v627 = vpop.f32.mrf.mxu0
        %v628 = vpop.f32.mrf.mxu0
        %v629 = vadd.f32 %v444, %v628
        %v630 = vpop.f32.mrf.mxu0
        %631 = vdwg.mxu0
        %vm632 = vcmp.ge.f32.partialorder %v570, 0.0
        %vm633 = vcmp.ge.f32.partialorder %v573, 0.0
        %vm634 = vcmp.ge.f32.partialorder %v578, 0.0
        %vm635 = vcmp.ge.f32.partialorder %v581, 0.0
        %vm636 = vcmp.ge.f32.partialorder %v586, 0.0
        %vm637 = vcmp.ge.f32.partialorder %v589, 0.0
        %vm638 = vcmp.ge.f32.partialorder %v594, 0.0
        %vm639 = vcmp.ge.f32.partialorder %v597, 0.0
        %vm640 = vcmp.ge.f32.partialorder %v602, 0.0
        %vm641 = vcmp.ge.f32.partialorder %v605, 0.0
        %vm642 = vcmp.ge.f32.partialorder %v610, 0.0
        %vm643 = vcmp.ge.f32.partialorder %v613, 0.0
        %vm644 = vcmp.ge.f32.partialorder %v618, 0.0
        %vm645 = vcmp.ge.f32.partialorder %v621, 0.0
        %vm646 = vcmp.ge.f32.partialorder %v626, 0.0
        %vm647 = vcmp.ge.f32.partialorder %v629, 0.0
        %648 = vset.pattern.permute.xlu0 6
        %649 = vperm.xlu0 %648, %v262
        %v650 = vpop.permute.xlu0 %649
        %652 = vset.pattern.permute.xlu0 6
        %653 = vperm.xlu0 %652, %v263
        %v654 = vpop.permute.xlu0 %653
        %656 = vset.pattern.permute.xlu0 6
        %657 = vperm.xlu0 %656, %v264
        %v658 = vpop.permute.xlu0 %657
        %660 = vset.pattern.permute.xlu0 6
        %661 = vperm.xlu0 %660, %v265
        %v662 = vpop.permute.xlu0 %661
        %664 = vset.pattern.permute.xlu0 6
        %665 = vperm.xlu0 %664, %v266
        %v666 = vpop.permute.xlu0 %665
        %668 = vset.pattern.permute.xlu0 6
        %669 = vperm.xlu0 %668, %v267
        %v670 = vpop.permute.xlu0 %669
        %672 = vset.pattern.permute.xlu0 6
        %673 = vperm.xlu0 %672, %v268
        %v674 = vpop.permute.xlu0 %673
        %676 = vset.pattern.permute.xlu0 6
        %677 = vperm.xlu0 %676, %v269
        %v678 = vpop.permute.xlu0 %677
        %680 = vset.pattern.permute.xlu0 6
        %681 = vperm.xlu0 %680, %v270
        %v682 = vpop.permute.xlu0 %681
        %684 = vset.pattern.permute.xlu0 6
        %685 = vperm.xlu0 %684, %v271
        %v686 = vpop.permute.xlu0 %685
        %688 = vset.pattern.permute.xlu0 6
        %689 = vperm.xlu0 %688, %v272
        %v690 = vpop.permute.xlu0 %689
        %692 = vset.pattern.permute.xlu0 6
        %693 = vperm.xlu0 %692, %v273
        %v694 = vpop.permute.xlu0 %693
        %696 = vset.pattern.permute.xlu0 6
        %697 = vperm.xlu0 %696, %v274
        %v698 = vpop.permute.xlu0 %697
        %700 = vset.pattern.permute.xlu0 6
        %701 = vperm.xlu0 %700, %v275
        %v702 = vpop.permute.xlu0 %701
        %704 = vset.pattern.permute.xlu0 6
        %705 = vperm.xlu0 %704, %v276
        %v706 = vpop.permute.xlu0 %705
        %708 = vset.pattern.permute.xlu0 6
        %709 = vperm.xlu0 %708, %v277
        %v710 = vpop.permute.xlu0 %709
        %v712 = vmul.f32 %v650, %v570
        %v713 = vmul.f32 %v654, %v573
        %v714 = vmul.f32 %v658, %v578
        %v715 = vmul.f32 %v662, %v581
        %v716 = vmul.f32 %v666, %v586
        %v717 = vmul.f32 %v670, %v589
        %v718 = vmul.f32 %v674, %v594
        %v719 = vmul.f32 %v678, %v597
        %v720 = vmul.f32 %v682, %v602
        %v721 = vmul.f32 %v686, %v605
        %v722 = vmul.f32 %v690, %v610
        %v723 = vmul.f32 %v694, %v613
        %v724 = vmul.f32 %v698, %v618
        %v725 = vmul.f32 %v702, %v621
        %v726 = vmul.f32 %v706, %v626
        %v727 = vmul.f32 %v710, %v629
        %v728 = vsel %vm632, %v570, %v712
        %v729 = vsel %vm633, %v573, %v713
        %v730 = vsel %vm634, %v578, %v714
        %v731 = vsel %vm635, %v581, %v715
        %v732 = vsel %vm636, %v586, %v716
        %v733 = vsel %vm637, %v589, %v717
        %v734 = vsel %vm638, %v594, %v718
        %v735 = vsel %vm639, %v597, %v719
        %v736 = vsel %vm640, %v602, %v720
        %v737 = vsel %vm641, %v605, %v721
        %v738 = vsel %vm642, %v610, %v722
        %v739 = vsel %vm643, %v613, %v723
        %v740 = vsel %vm644, %v618, %v724
        %v741 = vsel %vm645, %v621, %v725
        %v742 = vsel %vm646, %v626, %v726
        %v743 = vsel %vm647, %v629, %v727
        %v744 = vadd.f32 %v728, %v729
        %v745 = vadd.f32 %v744, %v730
        %v746 = vadd.f32 %v745, %v731
        %v747 = vadd.f32 %v746, %v732
        %v748 = vadd.f32 %v747, %v733
        %v749 = vadd.f32 %v748, %v734
        %v750 = vadd.f32 %v749, %v735
        %v751 = vadd.f32 %v750, %v736
        %v752 = vadd.f32 %v751, %v737
        %v753 = vadd.f32 %v752, %v738
        %v754 = vadd.f32 %v753, %v739
        %v755 = vadd.f32 %v754, %v740
        %v756 = vadd.f32 %v755, %v741
        %v757 = vadd.f32 %v756, %v742
        %v758 = vadd.f32 %v757, %v743
        %759 = vadd.xlane.f32.xlu0 %v758
        %v760 = vpop.xlane.xlu0 %759
        %v761 = vrot.slane %v760, 4
        %v762 = vadd.f32 %v760, %v761
        %v763 = vrot.slane %v762, 2
        %v764 = vadd.f32 %v762, %v763
        %v765 = vrot.slane %v764, 1
        %v766 = vadd.f32 %v764, %v765
        %s767 = vtos %v766
        %v768 = vmul.f32 %v728, %v728
        %v769 = vmul.f32 %v729, %v729
        %v770 = vmul.f32 %v730, %v730
        %v771 = vmul.f32 %v731, %v731
        %v772 = vmul.f32 %v732, %v732
        %v773 = vmul.f32 %v733, %v733
        %v774 = vmul.f32 %v734, %v734
        %v775 = vmul.f32 %v735, %v735
        %v776 = vmul.f32 %v736, %v736
        %v777 = vmul.f32 %v737, %v737
        %v778 = vmul.f32 %v738, %v738
        %v779 = vmul.f32 %v739, %v739
        %v780 = vmul.f32 %v740, %v740
        %v781 = vmul.f32 %v741, %v741
        %v782 = vmul.f32 %v742, %v742
        %v783 = vmul.f32 %v743, %v743
        %v784 = vadd.f32 %v768, %v769
        %v785 = vadd.f32 %v784, %v770
        %v786 = vadd.f32 %v785, %v771
        %v787 = vadd.f32 %v786, %v772
        %v788 = vadd.f32 %v787, %v773
        %v789 = vadd.f32 %v788, %v774
        %v790 = vadd.f32 %v789, %v775
        %v791 = vadd.f32 %v790, %v776
        %v792 = vadd.f32 %v791, %v777
        %v793 = vadd.f32 %v792, %v778
        %v794 = vadd.f32 %v793, %v779
        %v795 = vadd.f32 %v794, %v780
        %v796 = vadd.f32 %v795, %v781
        %v797 = vadd.f32 %v796, %v782
        %v798 = vadd.f32 %v797, %v783
        %799 = vadd.xlane.f32.xlu0 %v798
        %v800 = vpop.xlane.xlu0 %799
        %v801 = vrot.slane %v800, 4
        %v802 = vadd.f32 %v800, %v801
        %v803 = vrot.slane %v802, 2
        %v804 = vadd.f32 %v802, %v803
        %v805 = vrot.slane %v804, 1
        %v806 = vadd.f32 %v804, %v805
        %s807 = vtos %v806
        %s808 = smul.f32 %s767, 6.1035156e-05
        %s809 = smul.f32 %s807, 6.1035156e-05
        %s810 = smul.f32 %s808, %s808
        %s811 = ssub.f32 %s809, %s810
        %s812 = smax.f32 %s811, 0.0
        %s813 = sadd.f32 %s812, 1e-08
        %v814 = vstv %s813
        %v815 = vrsqrt.pop %v814
        %s816 = vtos %v815
        %v817 = vstv %s816
        %v818 = vmul.f32 %v817, %v262
        %v819 = vmul.f32 %v817, %v263
        %v820 = vmul.f32 %v817, %v264
        %v821 = vmul.f32 %v817, %v265
        %v822 = vmul.f32 %v817, %v266
        %v823 = vmul.f32 %v817, %v267
        %v824 = vmul.f32 %v817, %v268
        %v825 = vmul.f32 %v817, %v269
        %v826 = vmul.f32 %v817, %v270
        %v827 = vmul.f32 %v817, %v271
        %v828 = vmul.f32 %v817, %v272
        %v829 = vmul.f32 %v817, %v273
        %v830 = vmul.f32 %v817, %v274
        %v831 = vmul.f32 %v817, %v275
        %v832 = vmul.f32 %v817, %v276
        %v833 = vmul.f32 %v817, %v277
        %v834 = vstv %s808
        %v835 = vmul.f32 %v834, %v818
        %v836 = vmul.f32 %v834, %v819
        %v837 = vmul.f32 %v834, %v820
        %v838 = vmul.f32 %v834, %v821
        %v839 = vmul.f32 %v834, %v822
        %v840 = vmul.f32 %v834, %v823
        %v841 = vmul.f32 %v834, %v824
        %v842 = vmul.f32 %v834, %v825
        %v843 = vmul.f32 %v834, %v826
        %v844 = vmul.f32 %v834, %v827
        %v845 = vmul.f32 %v834, %v828
        %v846 = vmul.f32 %v834, %v829
        %v847 = vmul.f32 %v834, %v830
        %v848 = vmul.f32 %v834, %v831
        %v849 = vmul.f32 %v834, %v832
        %v850 = vmul.f32 %v834, %v833
        %867 = vrot.lane.b32.xlu0 %v835, 1
        %v868 = vpop.permute.xlu0 %867
        %869 = vrot.lane.b32.xlu0 %v836, 1
        %v870 = vpop.permute.xlu0 %869
        %871 = vrot.lane.b32.xlu0 %v837, 1
        %v872 = vpop.permute.xlu0 %871
        %873 = vrot.lane.b32.xlu0 %v838, 1
        %v874 = vpop.permute.xlu0 %873
        %875 = vrot.lane.b32.xlu0 %v839, 1
        %v876 = vpop.permute.xlu0 %875
        %877 = vrot.lane.b32.xlu0 %v840, 1
        %v878 = vpop.permute.xlu0 %877
        %879 = vrot.lane.b32.xlu0 %v841, 1
        %v880 = vpop.permute.xlu0 %879
        %881 = vrot.lane.b32.xlu0 %v842, 1
        %v882 = vpop.permute.xlu0 %881
        %883 = vrot.lane.b32.xlu0 %v843, 1
        %v884 = vpop.permute.xlu0 %883
        %885 = vrot.lane.b32.xlu0 %v844, 1
        %v886 = vpop.permute.xlu0 %885
        %887 = vrot.lane.b32.xlu0 %v845, 1
        %v888 = vpop.permute.xlu0 %887
        %889 = vrot.lane.b32.xlu0 %v846, 1
        %v890 = vpop.permute.xlu0 %889
        %891 = vrot.lane.b32.xlu0 %v847, 1
        %v892 = vpop.permute.xlu0 %891
        %893 = vrot.lane.b32.xlu0 %v848, 1
        %v894 = vpop.permute.xlu0 %893
        %895 = vrot.lane.b32.xlu0 %v849, 1
        %v896 = vpop.permute.xlu0 %895
        %897 = vrot.lane.b32.xlu0 %v850, 1
        %v898 = vpop.permute.xlu0 %897
        %v915 = vsub.f32 %v262, %v868
        %v916 = vsub.f32 %v263, %v870
        %v917 = vsub.f32 %v264, %v872
        %v918 = vsub.f32 %v265, %v874
        %v919 = vsub.f32 %v266, %v876
        %v920 = vsub.f32 %v267, %v878
        %v921 = vsub.f32 %v268, %v880
        %v922 = vsub.f32 %v269, %v882
        %v923 = vsub.f32 %v270, %v884
        %v924 = vsub.f32 %v271, %v886
        %v925 = vsub.f32 %v272, %v888
        %v926 = vsub.f32 %v273, %v890
        %v927 = vsub.f32 %v274, %v892
        %v928 = vsub.f32 %v275, %v894
        %v929 = vsub.f32 %v276, %v896
        %v930 = vsub.f32 %v277, %v898
        %932 = vset.pattern.permute.xlu0 1
        %933 = vperm.xlu0 %932, %v818
        %v934 = vpop.permute.xlu0 %933
        %937 = vset.pattern.permute.xlu0 1
        %938 = vperm.xlu0 %937, %v819
        %v939 = vpop.permute.xlu0 %938
        %942 = vset.pattern.permute.xlu0 1
        %943 = vperm.xlu0 %942, %v820
        %v944 = vpop.permute.xlu0 %943
        %947 = vset.pattern.permute.xlu0 1
        %948 = vperm.xlu0 %947, %v821
        %v949 = vpop.permute.xlu0 %948
        %952 = vset.pattern.permute.xlu0 1
        %953 = vperm.xlu0 %952, %v822
        %v954 = vpop.permute.xlu0 %953
        %957 = vset.pattern.permute.xlu0 1
        %958 = vperm.xlu0 %957, %v823
        %v959 = vpop.permute.xlu0 %958
        %962 = vset.pattern.permute.xlu0 1
        %963 = vperm.xlu0 %962, %v824
        %v964 = vpop.permute.xlu0 %963
        %967 = vset.pattern.permute.xlu0 1
        %968 = vperm.xlu0 %967, %v825
        %v969 = vpop.permute.xlu0 %968
        %972 = vset.pattern.permute.xlu0 1
        %973 = vperm.xlu0 %972, %v826
        %v974 = vpop.permute.xlu0 %973
        %977 = vset.pattern.permute.xlu0 1
        %978 = vperm.xlu0 %977, %v827
        %v979 = vpop.permute.xlu0 %978
        %982 = vset.pattern.permute.xlu0 1
        %983 = vperm.xlu0 %982, %v828
        %v984 = vpop.permute.xlu0 %983
        %987 = vset.pattern.permute.xlu0 1
        %988 = vperm.xlu0 %987, %v829
        %v989 = vpop.permute.xlu0 %988
        %992 = vset.pattern.permute.xlu0 1
        %993 = vperm.xlu0 %992, %v830
        %v994 = vpop.permute.xlu0 %993
        %997 = vset.pattern.permute.xlu0 1
        %998 = vperm.xlu0 %997, %v831
        %v999 = vpop.permute.xlu0 %998
        %1002 = vset.pattern.permute.xlu0 1
        %1003 = vperm.xlu0 %1002, %v832
        %v1004 = vpop.permute.xlu0 %1003
        %1007 = vset.pattern.permute.xlu0 1
        %1008 = vperm.xlu0 %1007, %v833
        %v1009 = vpop.permute.xlu0 %1008
        %v1011 = vmul.f32 %v728, %v934
        %v1012 = vmul.f32 %v729, %v939
        %v1013 = vmul.f32 %v730, %v944
        %v1014 = vmul.f32 %v731, %v949
        %v1015 = vmul.f32 %v732, %v954
        %v1016 = vmul.f32 %v733, %v959
        %v1017 = vmul.f32 %v734, %v964
        %v1018 = vmul.f32 %v735, %v969
        %v1019 = vmul.f32 %v736, %v974
        %v1020 = vmul.f32 %v737, %v979
        %v1021 = vmul.f32 %v738, %v984
        %v1022 = vmul.f32 %v739, %v989
        %v1023 = vmul.f32 %v740, %v994
        %v1024 = vmul.f32 %v741, %v999
        %v1025 = vmul.f32 %v742, %v1004
        %v1026 = vmul.f32 %v743, %v1009
        %1028 = vset.pattern.permute.xlu0 2
        %1029 = vperm.xlu0 %1028, %v915
        %v1030 = vpop.permute.xlu0 %1029
        %1033 = vset.pattern.permute.xlu0 2
        %1034 = vperm.xlu0 %1033, %v916
        %v1035 = vpop.permute.xlu0 %1034
        %1038 = vset.pattern.permute.xlu0 2
        %1039 = vperm.xlu0 %1038, %v917
        %v1040 = vpop.permute.xlu0 %1039
        %1043 = vset.pattern.permute.xlu0 2
        %1044 = vperm.xlu0 %1043, %v918
        %v1045 = vpop.permute.xlu0 %1044
        %1048 = vset.pattern.permute.xlu0 2
        %1049 = vperm.xlu0 %1048, %v919
        %v1050 = vpop.permute.xlu0 %1049
        %1053 = vset.pattern.permute.xlu0 2
        %1054 = vperm.xlu0 %1053, %v920
        %v1055 = vpop.permute.xlu0 %1054
        %1058 = vset.pattern.permute.xlu0 2
        %1059 = vperm.xlu0 %1058, %v921
        %v1060 = vpop.permute.xlu0 %1059
        %1063 = vset.pattern.permute.xlu0 2
        %1064 = vperm.xlu0 %1063, %v922
        %v1065 = vpop.permute.xlu0 %1064
        %1068 = vset.pattern.permute.xlu0 2
        %1069 = vperm.xlu0 %1068, %v923
        %v1070 = vpop.permute.xlu0 %1069
        %1073 = vset.pattern.permute.xlu0 2
        %1074 = vperm.xlu0 %1073, %v924
        %v1075 = vpop.permute.xlu0 %1074
        %1078 = vset.pattern.permute.xlu0 2
        %1079 = vperm.xlu0 %1078, %v925
        %v1080 = vpop.permute.xlu0 %1079
        %1083 = vset.pattern.permute.xlu0 2
        %1084 = vperm.xlu0 %1083, %v926
        %v1085 = vpop.permute.xlu0 %1084
        %1088 = vset.pattern.permute.xlu0 2
        %1089 = vperm.xlu0 %1088, %v927
        %v1090 = vpop.permute.xlu0 %1089
        %1093 = vset.pattern.permute.xlu0 2
        %1094 = vperm.xlu0 %1093, %v928
        %v1095 = vpop.permute.xlu0 %1094
        %1098 = vset.pattern.permute.xlu0 2
        %1099 = vperm.xlu0 %1098, %v929
        %v1100 = vpop.permute.xlu0 %1099
        %1103 = vset.pattern.permute.xlu0 2
        %1104 = vperm.xlu0 %1103, %v930
        %v1105 = vpop.permute.xlu0 %1104
        %v1107 = vadd.f32 %v1011, %v1030
        %v1108 = vadd.f32 %v1012, %v1035
        %v1109 = vadd.f32 %v1013, %v1040
        %v1110 = vadd.f32 %v1014, %v1045
        %v1111 = vadd.f32 %v1015, %v1050
        %v1112 = vadd.f32 %v1016, %v1055
        %v1113 = vadd.f32 %v1017, %v1060
        %v1114 = vadd.f32 %v1018, %v1065
        %v1115 = vadd.f32 %v1019, %v1070
        %v1116 = vadd.f32 %v1020, %v1075
        %v1117 = vadd.f32 %v1021, %v1080
        %v1118 = vadd.f32 %v1022, %v1085
        %v1119 = vadd.f32 %v1023, %v1090
        %v1120 = vadd.f32 %v1024, %v1095
        %v1121 = vadd.f32 %v1025, %v1100
        %v1122 = vadd.f32 %v1026, %v1105
        %1123 = vst [vmem:[#allocation2 + $0x8] sm:$0xff] %v1107
        %1124 = vst [vmem:[#allocation2 + $0x20] sm:$0xff] %v1108
        %1125 = vst [vmem:[#allocation2 + $0x38] sm:$0xff] %v1109
        %1126 = vst [vmem:[#allocation2 + $0x50] sm:$0xff] %v1110
        %1127 = vst [vmem:[#allocation2 + $0x68] sm:$0xff] %v1111
        %1128 = vst [vmem:[#allocation2 + $0x80] sm:$0xff] %v1112
        %1129 = vst [vmem:[#allocation2 + $0x98] sm:$0xff] %v1113
        %1130 = vst [vmem:[#allocation2 + $0xb0] sm:$0xff] %v1114
        %1131 = vst [vmem:[#allocation2 + $0xc8] sm:$0xff] %v1115
        %1132 = vst [vmem:[#allocation2 + $0xe0] sm:$0xff] %v1116
        %1133 = vst [vmem:[#allocation2 + $0xf8] sm:$0xff] %v1117
        %1134 = vst [vmem:[#allocation2 + $0x110] sm:$0xff] %v1118
        %1135 = vst [vmem:[#allocation2 + $0x128] sm:$0xff] %v1119
        %1136 = vst [vmem:[#allocation2 + $0x140] sm:$0xff] %v1120
        %1137 = vst [vmem:[#allocation2 + $0x158] sm:$0xff] %v1121
        %1138 = vst [vmem:[#allocation2 + $0x170] sm:$0xff] %v1122
        %v1139 = vld [vmem:[#allocation2] sm:$0xff]
        %v1140 = vld [vmem:[#allocation2 + $0x8] sm:$0xff]
        %v1141 = vld [vmem:[#allocation2 + $0x10] sm:$0xff]
        %v1142 = vld [vmem:[#allocation2 + $0x18] sm:$0xff]
        %v1143 = vld [vmem:[#allocation2 + $0x20] sm:$0xff]
        %v1144 = vld [vmem:[#allocation2 + $0x28] sm:$0xff]
        %v1145 = vld [vmem:[#allocation2 + $0x30] sm:$0xff]
        %v1146 = vld [vmem:[#allocation2 + $0x38] sm:$0xff]
        %v1147 = vld [vmem:[#allocation2 + $0x40] sm:$0xff]
        %v1148 = vld [vmem:[#allocation2 + $0x48] sm:$0xff]
        %v1149 = vld [vmem:[#allocation2 + $0x50] sm:$0xff]
        %v1150 = vld [vmem:[#allocation2 + $0x58] sm:$0xff]
        %v1151 = vld [vmem:[#allocation2 + $0x60] sm:$0xff]
        %v1152 = vld [vmem:[#allocation2 + $0x68] sm:$0xff]
        %v1153 = vld [vmem:[#allocation2 + $0x70] sm:$0xff]
        %v1154 = vld [vmem:[#allocation2 + $0x78] sm:$0xff]
        %v1155 = vld [vmem:[#allocation2 + $0x80] sm:$0xff]
        %v1156 = vld [vmem:[#allocation2 + $0x88] sm:$0xff]
        %v1157 = vld [vmem:[#allocation2 + $0x90] sm:$0xff]
        %v1158 = vld [vmem:[#allocation2 + $0x98] sm:$0xff]
        %v1159 = vld [vmem:[#allocation2 + $0xa0] sm:$0xff]
        %v1160 = vld [vmem:[#allocation2 + $0xa8] sm:$0xff]
        %v1161 = vld [vmem:[#allocation2 + $0xb0] sm:$0xff]
        %v1162 = vld [vmem:[#allocation2 + $0xb8] sm:$0xff]
        %v1163 = vld [vmem:[#allocation2 + $0xc0] sm:$0xff]
        %v1164 = vld [vmem:[#allocation2 + $0xc8] sm:$0xff]
        %v1165 = vld [vmem:[#allocation2 + $0xd0] sm:$0xff]
        %v1166 = vld [vmem:[#allocation2 + $0xd8] sm:$0xff]
        %v1167 = vld [vmem:[#allocation2 + $0xe0] sm:$0xff]
        %v1168 = vld [vmem:[#allocation2 + $0xe8] sm:$0xff]
        %v1169 = vld [vmem:[#allocation2 + $0xf0] sm:$0xff]
        %v1170 = vld [vmem:[#allocation2 + $0xf8] sm:$0xff]
        %v1171 = vld [vmem:[#allocation2 + $0x100] sm:$0xff]
        %v1172 = vld [vmem:[#allocation2 + $0x108] sm:$0xff]
        %v1173 = vld [vmem:[#allocation2 + $0x110] sm:$0xff]
        %v1174 = vld [vmem:[#allocation2 + $0x118] sm:$0xff]
        %v1175 = vld [vmem:[#allocation2 + $0x120] sm:$0xff]
        %v1176 = vld [vmem:[#allocation2 + $0x128] sm:$0xff]
        %v1177 = vld [vmem:[#allocation2 + $0x130] sm:$0xff]
        %v1178 = vld [vmem:[#allocation2 + $0x138] sm:$0xff]
        %v1179 = vld [vmem:[#allocation2 + $0x140] sm:$0xff]
        %v1180 = vld [vmem:[#allocation2 + $0x148] sm:$0xff]
        %v1181 = vld [vmem:[#allocation2 + $0x150] sm:$0xff]
        %v1182 = vld [vmem:[#allocation2 + $0x158] sm:$0xff]
        %v1183 = vld [vmem:[#allocation2 + $0x160] sm:$0xff]
        %v1184 = vld [vmem:[#allocation2 + $0x168] sm:$0xff]
        %v1185 = vld [vmem:[#allocation2 + $0x170] sm:$0xff]
        %v1186 = vld [vmem:[#allocation2 + $0x178] sm:$0xff]
        %1187 = vset.pattern.permute.xlu0 8
        %1188 = vperm.xlu0 %1187, %v262
        %v1189 = vpop.permute.xlu0 %1188
        %1191 = vset.pattern.permute.xlu0 8
        %1192 = vperm.xlu0 %1191, %v263
        %v1193 = vpop.permute.xlu0 %1192
        %1195 = vset.pattern.permute.xlu0 8
        %1196 = vperm.xlu0 %1195, %v264
        %v1197 = vpop.permute.xlu0 %1196
        %1199 = vset.pattern.permute.xlu0 8
        %1200 = vperm.xlu0 %1199, %v265
        %v1201 = vpop.permute.xlu0 %1200
        %1203 = vset.pattern.permute.xlu0 8
        %1204 = vperm.xlu0 %1203, %v266
        %v1205 = vpop.permute.xlu0 %1204
        %1207 = vset.pattern.permute.xlu0 8
        %1208 = vperm.xlu0 %1207, %v267
        %v1209 = vpop.permute.xlu0 %1208
        %1211 = vset.pattern.permute.xlu0 8
        %1212 = vperm.xlu0 %1211, %v268
        %v1213 = vpop.permute.xlu0 %1212
        %1215 = vset.pattern.permute.xlu0 8
        %1216 = vperm.xlu0 %1215, %v269
        %v1217 = vpop.permute.xlu0 %1216
        %1219 = vset.pattern.permute.xlu0 8
        %1220 = vperm.xlu0 %1219, %v270
        %v1221 = vpop.permute.xlu0 %1220
        %1223 = vset.pattern.permute.xlu0 8
        %1224 = vperm.xlu0 %1223, %v271
        %v1225 = vpop.permute.xlu0 %1224
        %1227 = vset.pattern.permute.xlu0 8
        %1228 = vperm.xlu0 %1227, %v272
        %v1229 = vpop.permute.xlu0 %1228
        %1231 = vset.pattern.permute.xlu0 8
        %1232 = vperm.xlu0 %1231, %v273
        %v1233 = vpop.permute.xlu0 %1232
        %1235 = vset.pattern.permute.xlu0 8
        %1236 = vperm.xlu0 %1235, %v274
        %v1237 = vpop.permute.xlu0 %1236
        %1239 = vset.pattern.permute.xlu0 8
        %1240 = vperm.xlu0 %1239, %v275
        %v1241 = vpop.permute.xlu0 %1240
        %1243 = vset.pattern.permute.xlu0 8
        %1244 = vperm.xlu0 %1243, %v276
        %v1245 = vpop.permute.xlu0 %1244
        %1247 = vset.pattern.permute.xlu0 8
        %1248 = vperm.xlu0 %1247, %v277
        %v1249 = vpop.permute.xlu0 %1248
        %v1251 = vmul.f32 %v1189, %v1139
        %v1252 = vmul.f32 %v1189, %v1140
        %v1253 = vmul.f32 %v1193, %v1142
        %v1254 = vmul.f32 %v1193, %v1143
        %v1255 = vmul.f32 %v1197, %v1145
        %v1256 = vmul.f32 %v1197, %v1146
        %v1257 = vmul.f32 %v1201, %v1148
        %v1258 = vmul.f32 %v1201, %v1149
        %v1259 = vmul.f32 %v1205, %v1151
        %v1260 = vmul.f32 %v1205, %v1152
        %v1261 = vmul.f32 %v1209, %v1154
        %v1262 = vmul.f32 %v1209, %v1155
        %v1263 = vmul.f32 %v1213, %v1157
        %v1264 = vmul.f32 %v1213, %v1158
        %v1265 = vmul.f32 %v1217, %v1160
        %v1266 = vmul.f32 %v1217, %v1161
        %v1267 = vmul.f32 %v1221, %v1163
        %v1268 = vmul.f32 %v1221, %v1164
        %v1269 = vmul.f32 %v1225, %v1166
        %v1270 = vmul.f32 %v1225, %v1167
        %v1271 = vmul.f32 %v1229, %v1169
        %v1272 = vmul.f32 %v1229, %v1170
        %v1273 = vmul.f32 %v1233, %v1172
        %v1274 = vmul.f32 %v1233, %v1173
        %v1275 = vmul.f32 %v1237, %v1175
        %v1276 = vmul.f32 %v1237, %v1176
        %v1277 = vmul.f32 %v1241, %v1178
        %v1278 = vmul.f32 %v1241, %v1179
        %v1279 = vmul.f32 %v1245, %v1181
        %v1280 = vmul.f32 %v1245, %v1182
        %v1281 = vmul.f32 %v1249, %v1184
        %v1282 = vmul.f32 %v1249, %v1185
        %1283 = vset.pattern.permute.xlu0 3
        %1284 = vperm.xlu0 %1283, %v262
        %v1285 = vpop.permute.xlu0 %1284
        %1287 = vset.pattern.permute.xlu0 3
        %1288 = vperm.xlu0 %1287, %v263
        %v1289 = vpop.permute.xlu0 %1288
        %1291 = vset.pattern.permute.xlu0 3
        %1292 = vperm.xlu0 %1291, %v264
        %v1293 = vpop.permute.xlu0 %1292
        %1295 = vset.pattern.permute.xlu0 3
        %1296 = vperm.xlu0 %1295, %v265
        %v1297 = vpop.permute.xlu0 %1296
        %1299 = vset.pattern.permute.xlu0 3
        %1300 = vperm.xlu0 %1299, %v266
        %v1301 = vpop.permute.xlu0 %1300
        %1303 = vset.pattern.permute.xlu0 3
        %1304 = vperm.xlu0 %1303, %v267
        %v1305 = vpop.permute.xlu0 %1304
        %1307 = vset.pattern.permute.xlu0 3
        %1308 = vperm.xlu0 %1307, %v268
        %v1309 = vpop.permute.xlu0 %1308
        %1311 = vset.pattern.permute.xlu0 3
        %1312 = vperm.xlu0 %1311, %v269
        %v1313 = vpop.permute.xlu0 %1312
        %1315 = vset.pattern.permute.xlu0 3
        %1316 = vperm.xlu0 %1315, %v270
        %v1317 = vpop.permute.xlu0 %1316
        %1319 = vset.pattern.permute.xlu0 3
        %1320 = vperm.xlu0 %1319, %v271
        %v1321 = vpop.permute.xlu0 %1320
        %1323 = vset.pattern.permute.xlu0 3
        %1324 = vperm.xlu0 %1323, %v272
        %v1325 = vpop.permute.xlu0 %1324
        %1327 = vset.pattern.permute.xlu0 3
        %1328 = vperm.xlu0 %1327, %v273
        %v1329 = vpop.permute.xlu0 %1328
        %1331 = vset.pattern.permute.xlu0 3
        %1332 = vperm.xlu0 %1331, %v274
        %v1333 = vpop.permute.xlu0 %1332
        %1335 = vset.pattern.permute.xlu0 3
        %1336 = vperm.xlu0 %1335, %v275
        %v1337 = vpop.permute.xlu0 %1336
        %1339 = vset.pattern.permute.xlu0 3
        %1340 = vperm.xlu0 %1339, %v276
        %v1341 = vpop.permute.xlu0 %1340
        %1343 = vset.pattern.permute.xlu0 3
        %1344 = vperm.xlu0 %1343, %v277
        %v1345 = vpop.permute.xlu0 %1344
        %v1347 = vadd.f32 %v1285, %v1251
        %v1348 = vadd.f32 %v1285, %v1252
        %v1349 = vadd.f32 %v1289, %v1253
        %v1350 = vadd.f32 %v1289, %v1254
        %v1351 = vadd.f32 %v1293, %v1255
        %v1352 = vadd.f32 %v1293, %v1256
        %v1353 = vadd.f32 %v1297, %v1257
        %v1354 = vadd.f32 %v1297, %v1258
        %v1355 = vadd.f32 %v1301, %v1259
        %v1356 = vadd.f32 %v1301, %v1260
        %v1357 = vadd.f32 %v1305, %v1261
        %v1358 = vadd.f32 %v1305, %v1262
        %v1359 = vadd.f32 %v1309, %v1263
        %v1360 = vadd.f32 %v1309, %v1264
        %v1361 = vadd.f32 %v1313, %v1265
        %v1362 = vadd.f32 %v1313, %v1266
        %v1363 = vadd.f32 %v1317, %v1267
        %v1364 = vadd.f32 %v1317, %v1268
        %v1365 = vadd.f32 %v1321, %v1269
        %v1366 = vadd.f32 %v1321, %v1270
        %v1367 = vadd.f32 %v1325, %v1271
        %v1368 = vadd.f32 %v1325, %v1272
        %v1369 = vadd.f32 %v1329, %v1273
        %v1370 = vadd.f32 %v1329, %v1274
        %v1371 = vadd.f32 %v1333, %v1275
        %v1372 = vadd.f32 %v1333, %v1276
        %v1373 = vadd.f32 %v1337, %v1277
        %v1374 = vadd.f32 %v1337, %v1278
        %v1375 = vadd.f32 %v1341, %v1279
        %v1376 = vadd.f32 %v1341, %v1280
        %v1377 = vadd.f32 %v1345, %v1281
        %v1378 = vadd.f32 %v1345, %v1282
        %1379 = vset.pattern.permute.xlu0 9
        %1380 = vperm.xlu0 %1379, %v262
        %v1381 = vpop.permute.xlu0 %1380
        %1383 = vset.pattern.permute.xlu0 9
        %1384 = vperm.xlu0 %1383, %v263
        %v1385 = vpop.permute.xlu0 %1384
        %1387 = vset.pattern.permute.xlu0 9
        %1388 = vperm.xlu0 %1387, %v264
        %v1389 = vpop.permute.xlu0 %1388
        %1391 = vset.pattern.permute.xlu0 9
        %1392 = vperm.xlu0 %1391, %v265
        %v1393 = vpop.permute.xlu0 %1392
        %1395 = vset.pattern.permute.xlu0 9
        %1396 = vperm.xlu0 %1395, %v266
        %v1397 = vpop.permute.xlu0 %1396
        %1399 = vset.pattern.permute.xlu0 9
        %1400 = vperm.xlu0 %1399, %v267
        %v1401 = vpop.permute.xlu0 %1400
        %1403 = vset.pattern.permute.xlu0 9
        %1404 = vperm.xlu0 %1403, %v268
        %v1405 = vpop.permute.xlu0 %1404
        %1407 = vset.pattern.permute.xlu0 9
        %1408 = vperm.xlu0 %1407, %v269
        %v1409 = vpop.permute.xlu0 %1408
        %1411 = vset.pattern.permute.xlu0 9
        %1412 = vperm.xlu0 %1411, %v270
        %v1413 = vpop.permute.xlu0 %1412
        %1415 = vset.pattern.permute.xlu0 9
        %1416 = vperm.xlu0 %1415, %v271
        %v1417 = vpop.permute.xlu0 %1416
        %1419 = vset.pattern.permute.xlu0 9
        %1420 = vperm.xlu0 %1419, %v272
        %v1421 = vpop.permute.xlu0 %1420
        %1423 = vset.pattern.permute.xlu0 9
        %1424 = vperm.xlu0 %1423, %v273
        %v1425 = vpop.permute.xlu0 %1424
        %1427 = vset.pattern.permute.xlu0 9
        %1428 = vperm.xlu0 %1427, %v274
        %v1429 = vpop.permute.xlu0 %1428
        %1431 = vset.pattern.permute.xlu0 9
        %1432 = vperm.xlu0 %1431, %v275
        %v1433 = vpop.permute.xlu0 %1432
        %1435 = vset.pattern.permute.xlu0 9
        %1436 = vperm.xlu0 %1435, %v276
        %v1437 = vpop.permute.xlu0 %1436
        %1439 = vset.pattern.permute.xlu0 9
        %1440 = vperm.xlu0 %1439, %v277
        %v1441 = vpop.permute.xlu0 %1440
        %v1443 = vmul.f32 %v1381, %v1140
        %v1444 = vmul.f32 %v1385, %v1143
        %v1445 = vmul.f32 %v1389, %v1146
        %v1446 = vmul.f32 %v1393, %v1149
        %v1447 = vmul.f32 %v1397, %v1152
        %v1448 = vmul.f32 %v1401, %v1155
        %v1449 = vmul.f32 %v1405, %v1158
        %v1450 = vmul.f32 %v1409, %v1161
        %v1451 = vmul.f32 %v1413, %v1164
        %v1452 = vmul.f32 %v1417, %v1167
        %v1453 = vmul.f32 %v1421, %v1170
        %v1454 = vmul.f32 %v1425, %v1173
        %v1455 = vmul.f32 %v1429, %v1176
        %v1456 = vmul.f32 %v1433, %v1179
        %v1457 = vmul.f32 %v1437, %v1182
        %v1458 = vmul.f32 %v1441, %v1185
        %1475 = vrot.lane.b32.xlu0 %v1443, 126
        %v1476 = vpop.permute.xlu0 %1475
        %1477 = vrot.lane.b32.xlu0 %v1444, 126
        %v1478 = vpop.permute.xlu0 %1477
        %1479 = vrot.lane.b32.xlu0 %v1445, 126
        %v1480 = vpop.permute.xlu0 %1479
        %1481 = vrot.lane.b32.xlu0 %v1446, 126
        %v1482 = vpop.permute.xlu0 %1481
        %1483 = vrot.lane.b32.xlu0 %v1447, 126
        %v1484 = vpop.permute.xlu0 %1483
        %1485 = vrot.lane.b32.xlu0 %v1448, 126
        %v1486 = vpop.permute.xlu0 %1485
        %1487 = vrot.lane.b32.xlu0 %v1449, 126
        %v1488 = vpop.permute.xlu0 %1487
        %1489 = vrot.lane.b32.xlu0 %v1450, 126
        %v1490 = vpop.permute.xlu0 %1489
        %1491 = vrot.lane.b32.xlu0 %v1451, 126
        %v1492 = vpop.permute.xlu0 %1491
        %1493 = vrot.lane.b32.xlu0 %v1452, 126
        %v1494 = vpop.permute.xlu0 %1493
        %1495 = vrot.lane.b32.xlu0 %v1453, 126
        %v1496 = vpop.permute.xlu0 %1495
        %1497 = vrot.lane.b32.xlu0 %v1454, 126
        %v1498 = vpop.permute.xlu0 %1497
        %1499 = vrot.lane.b32.xlu0 %v1455, 126
        %v1500 = vpop.permute.xlu0 %1499
        %1501 = vrot.lane.b32.xlu0 %v1456, 126
        %v1502 = vpop.permute.xlu0 %1501
        %1503 = vrot.lane.b32.xlu0 %v1457, 126
        %v1504 = vpop.permute.xlu0 %1503
        %1505 = vrot.lane.b32.xlu0 %v1458, 126
        %v1506 = vpop.permute.xlu0 %1505
        %v1523 = vadd.f32 %v1347, %v1476
        %v1524 = vadd.f32 %v1348, %v1476
        %v1525 = vadd.f32 %v1349, %v1478
        %v1526 = vadd.f32 %v1350, %v1478
        %v1527 = vadd.f32 %v1351, %v1480
        %v1528 = vadd.f32 %v1352, %v1480
        %v1529 = vadd.f32 %v1353, %v1482
        %v1530 = vadd.f32 %v1354, %v1482
        %v1531 = vadd.f32 %v1355, %v1484
        %v1532 = vadd.f32 %v1356, %v1484
        %v1533 = vadd.f32 %v1357, %v1486
        %v1534 = vadd.f32 %v1358, %v1486
        %v1535 = vadd.f32 %v1359, %v1488
        %v1536 = vadd.f32 %v1360, %v1488
        %v1537 = vadd.f32 %v1361, %v1490
        %v1538 = vadd.f32 %v1362, %v1490
        %v1539 = vadd.f32 %v1363, %v1492
        %v1540 = vadd.f32 %v1364, %v1492
        %v1541 = vadd.f32 %v1365, %v1494
        %v1542 = vadd.f32 %v1366, %v1494
        %v1543 = vadd.f32 %v1367, %v1496
        %v1544 = vadd.f32 %v1368, %v1496
        %v1545 = vadd.f32 %v1369, %v1498
        %v1546 = vadd.f32 %v1370, %v1498
        %v1547 = vadd.f32 %v1371, %v1500
        %v1548 = vadd.f32 %v1372, %v1500
        %v1549 = vadd.f32 %v1373, %v1502
        %v1550 = vadd.f32 %v1374, %v1502
        %v1551 = vadd.f32 %v1375, %v1504
        %v1552 = vadd.f32 %v1376, %v1504
        %v1553 = vadd.f32 %v1377, %v1506
        %v1554 = vadd.f32 %v1378, %v1506
        %1555 = vset.pattern.permute.xlu0 10
        %1556 = vperm.xlu0 %1555, %v262
        %v1557 = vpop.permute.xlu0 %1556
        %1559 = vset.pattern.permute.xlu0 10
        %1560 = vperm.xlu0 %1559, %v263
        %v1561 = vpop.permute.xlu0 %1560
        %1563 = vset.pattern.permute.xlu0 10
        %1564 = vperm.xlu0 %1563, %v264
        %v1565 = vpop.permute.xlu0 %1564
        %1567 = vset.pattern.permute.xlu0 10
        %1568 = vperm.xlu0 %1567, %v265
        %v1569 = vpop.permute.xlu0 %1568
        %1571 = vset.pattern.permute.xlu0 10
        %1572 = vperm.xlu0 %1571, %v266
        %v1573 = vpop.permute.xlu0 %1572
        %1575 = vset.pattern.permute.xlu0 10
        %1576 = vperm.xlu0 %1575, %v267
        %v1577 = vpop.permute.xlu0 %1576
        %1579 = vset.pattern.permute.xlu0 10
        %1580 = vperm.xlu0 %1579, %v268
        %v1581 = vpop.permute.xlu0 %1580
        %1583 = vset.pattern.permute.xlu0 10
        %1584 = vperm.xlu0 %1583, %v269
        %v1585 = vpop.permute.xlu0 %1584
        %1587 = vset.pattern.permute.xlu0 10
        %1588 = vperm.xlu0 %1587, %v270
        %v1589 = vpop.permute.xlu0 %1588
        %1591 = vset.pattern.permute.xlu0 10
        %1592 = vperm.xlu0 %1591, %v271
        %v1593 = vpop.permute.xlu0 %1592
        %1595 = vset.pattern.permute.xlu0 10
        %1596 = vperm.xlu0 %1595, %v272
        %v1597 = vpop.permute.xlu0 %1596
        %1599 = vset.pattern.permute.xlu0 10
        %1600 = vperm.xlu0 %1599, %v273
        %v1601 = vpop.permute.xlu0 %1600
        %1603 = vset.pattern.permute.xlu0 10
        %1604 = vperm.xlu0 %1603, %v274
        %v1605 = vpop.permute.xlu0 %1604
        %1607 = vset.pattern.permute.xlu0 10
        %1608 = vperm.xlu0 %1607, %v275
        %v1609 = vpop.permute.xlu0 %1608
        %1611 = vset.pattern.permute.xlu0 10
        %1612 = vperm.xlu0 %1611, %v276
        %v1613 = vpop.permute.xlu0 %1612
        %1615 = vset.pattern.permute.xlu0 10
        %1616 = vperm.xlu0 %1615, %v277
        %v1617 = vpop.permute.xlu0 %1616
        %v1619 = vmul.f32 %v1557, %v1140
        %v1620 = vmul.f32 %v1557, %v1141
        %v1621 = vmul.f32 %v1561, %v1143
        %v1622 = vmul.f32 %v1561, %v1144
        %v1623 = vmul.f32 %v1565, %v1146
        %v1624 = vmul.f32 %v1565, %v1147
        %v1625 = vmul.f32 %v1569, %v1149
        %v1626 = vmul.f32 %v1569, %v1150
        %v1627 = vmul.f32 %v1573, %v1152
        %v1628 = vmul.f32 %v1573, %v1153
        %v1629 = vmul.f32 %v1577, %v1155
        %v1630 = vmul.f32 %v1577, %v1156
        %v1631 = vmul.f32 %v1581, %v1158
        %v1632 = vmul.f32 %v1581, %v1159
        %v1633 = vmul.f32 %v1585, %v1161
        %v1634 = vmul.f32 %v1585, %v1162
        %v1635 = vmul.f32 %v1589, %v1164
        %v1636 = vmul.f32 %v1589, %v1165
        %v1637 = vmul.f32 %v1593, %v1167
        %v1638 = vmul.f32 %v1593, %v1168
        %v1639 = vmul.f32 %v1597, %v1170
        %v1640 = vmul.f32 %v1597, %v1171
        %v1641 = vmul.f32 %v1601, %v1173
        %v1642 = vmul.f32 %v1601, %v1174
        %v1643 = vmul.f32 %v1605, %v1176
        %v1644 = vmul.f32 %v1605, %v1177
        %v1645 = vmul.f32 %v1609, %v1179
        %v1646 = vmul.f32 %v1609, %v1180
        %v1647 = vmul.f32 %v1613, %v1182
        %v1648 = vmul.f32 %v1613, %v1183
        %v1649 = vmul.f32 %v1617, %v1185
        %v1650 = vmul.f32 %v1617, %v1186
        %1683 = vrot.lane.b32.xlu0 %v1619, 124
        %v1684 = vpop.permute.xlu0 %1683
        %1685 = vrot.lane.b32.xlu0 %v1620, 124
        %v1686 = vpop.permute.xlu0 %1685
        %1687 = vrot.lane.b32.xlu0 %v1621, 124
        %v1688 = vpop.permute.xlu0 %1687
        %1689 = vrot.lane.b32.xlu0 %v1622, 124
        %v1690 = vpop.permute.xlu0 %1689
        %1691 = vrot.lane.b32.xlu0 %v1623, 124
        %v1692 = vpop.permute.xlu0 %1691
        %1693 = vrot.lane.b32.xlu0 %v1624, 124
        %v1694 = vpop.permute.xlu0 %1693
        %1695 = vrot.lane.b32.xlu0 %v1625, 124
        %v1696 = vpop.permute.xlu0 %1695
        %1697 = vrot.lane.b32.xlu0 %v1626, 124
        %v1698 = vpop.permute.xlu0 %1697
        %1699 = vrot.lane.b32.xlu0 %v1627, 124
        %v1700 = vpop.permute.xlu0 %1699
        %1701 = vrot.lane.b32.xlu0 %v1628, 124
        %v1702 = vpop.permute.xlu0 %1701
        %1703 = vrot.lane.b32.xlu0 %v1629, 124
        %v1704 = vpop.permute.xlu0 %1703
        %1705 = vrot.lane.b32.xlu0 %v1630, 124
        %v1706 = vpop.permute.xlu0 %1705
        %1707 = vrot.lane.b32.xlu0 %v1631, 124
        %v1708 = vpop.permute.xlu0 %1707
        %1709 = vrot.lane.b32.xlu0 %v1632, 124
        %v1710 = vpop.permute.xlu0 %1709
        %1711 = vrot.lane.b32.xlu0 %v1633, 124
        %v1712 = vpop.permute.xlu0 %1711
        %1713 = vrot.lane.b32.xlu0 %v1634, 124
        %v1714 = vpop.permute.xlu0 %1713
        %1715 = vrot.lane.b32.xlu0 %v1635, 124
        %v1716 = vpop.permute.xlu0 %1715
        %1717 = vrot.lane.b32.xlu0 %v1636, 124
        %v1718 = vpop.permute.xlu0 %1717
        %1719 = vrot.lane.b32.xlu0 %v1637, 124
        %v1720 = vpop.permute.xlu0 %1719
        %1721 = vrot.lane.b32.xlu0 %v1638, 124
        %v1722 = vpop.permute.xlu0 %1721
        %1723 = vrot.lane.b32.xlu0 %v1639, 124
        %v1724 = vpop.permute.xlu0 %1723
        %1725 = vrot.lane.b32.xlu0 %v1640, 124
        %v1726 = vpop.permute.xlu0 %1725
        %1727 = vrot.lane.b32.xlu0 %v1641, 124
        %v1728 = vpop.permute.xlu0 %1727
        %1729 = vrot.lane.b32.xlu0 %v1642, 124
        %v1730 = vpop.permute.xlu0 %1729
        %1731 = vrot.lane.b32.xlu0 %v1643, 124
        %v1732 = vpop.permute.xlu0 %1731
        %1733 = vrot.lane.b32.xlu0 %v1644, 124
        %v1734 = vpop.permute.xlu0 %1733
        %1735 = vrot.lane.b32.xlu0 %v1645, 124
        %v1736 = vpop.permute.xlu0 %1735
        %1737 = vrot.lane.b32.xlu0 %v1646, 124
        %v1738 = vpop.permute.xlu0 %1737
        %1739 = vrot.lane.b32.xlu0 %v1647, 124
        %v1740 = vpop.permute.xlu0 %1739
        %1741 = vrot.lane.b32.xlu0 %v1648, 124
        %v1742 = vpop.permute.xlu0 %1741
        %1743 = vrot.lane.b32.xlu0 %v1649, 124
        %v1744 = vpop.permute.xlu0 %1743
        %1745 = vrot.lane.b32.xlu0 %v1650, 124
        %v1746 = vpop.permute.xlu0 %1745
        %vm1747 = vcmask 1014784
        %v1748 = vsel %vm1747, %v1684, %v1686
        %v1749 = vsel %vm1747, %v1688, %v1690
        %v1750 = vsel %vm1747, %v1692, %v1694
        %v1751 = vsel %vm1747, %v1696, %v1698
        %v1752 = vsel %vm1747, %v1700, %v1702
        %v1753 = vsel %vm1747, %v1704, %v1706
        %v1754 = vsel %vm1747, %v1708, %v1710
        %v1755 = vsel %vm1747, %v1712, %v1714
        %v1756 = vsel %vm1747, %v1716, %v1718
        %v1757 = vsel %vm1747, %v1720, %v1722
        %v1758 = vsel %vm1747, %v1724, %v1726
        %v1759 = vsel %vm1747, %v1728, %v1730
        %v1760 = vsel %vm1747, %v1732, %v1734
        %v1761 = vsel %vm1747, %v1736, %v1738
        %v1762 = vsel %vm1747, %v1740, %v1742
        %v1763 = vsel %vm1747, %v1744, %v1746
        %v1796 = vadd.f32 %v1523, %v1684
        %v1797 = vadd.f32 %v1524, %v1748
        %v1798 = vadd.f32 %v1525, %v1688
        %v1799 = vadd.f32 %v1526, %v1749
        %v1800 = vadd.f32 %v1527, %v1692
        %v1801 = vadd.f32 %v1528, %v1750
        %v1802 = vadd.f32 %v1529, %v1696
        %v1803 = vadd.f32 %v1530, %v1751
        %v1804 = vadd.f32 %v1531, %v1700
        %v1805 = vadd.f32 %v1532, %v1752
        %v1806 = vadd.f32 %v1533, %v1704
        %v1807 = vadd.f32 %v1534, %v1753
        %v1808 = vadd.f32 %v1535, %v1708
        %v1809 = vadd.f32 %v1536, %v1754
        %v1810 = vadd.f32 %v1537, %v1712
        %v1811 = vadd.f32 %v1538, %v1755
        %v1812 = vadd.f32 %v1539, %v1716
        %v1813 = vadd.f32 %v1540, %v1756
        %v1814 = vadd.f32 %v1541, %v1720
        %v1815 = vadd.f32 %v1542, %v1757
        %v1816 = vadd.f32 %v1543, %v1724
        %v1817 = vadd.f32 %v1544, %v1758
        %v1818 = vadd.f32 %v1545, %v1728
        %v1819 = vadd.f32 %v1546, %v1759
        %v1820 = vadd.f32 %v1547, %v1732
        %v1821 = vadd.f32 %v1548, %v1760
        %v1822 = vadd.f32 %v1549, %v1736
        %v1823 = vadd.f32 %v1550, %v1761
        %v1824 = vadd.f32 %v1551, %v1740
        %v1825 = vadd.f32 %v1552, %v1762
        %v1826 = vadd.f32 %v1553, %v1744
        %v1827 = vadd.f32 %v1554, %v1763
        %vm1828 = vcmp.ge.f32.partialorder %v1796, 0.0
        %vm1829 = vcmp.ge.f32.partialorder %v1797, 0.0
        %vm1830 = vcmp.ge.f32.partialorder %v1798, 0.0
        %vm1831 = vcmp.ge.f32.partialorder %v1799, 0.0
        %vm1832 = vcmp.ge.f32.partialorder %v1800, 0.0
        %vm1833 = vcmp.ge.f32.partialorder %v1801, 0.0
        %vm1834 = vcmp.ge.f32.partialorder %v1802, 0.0
        %vm1835 = vcmp.ge.f32.partialorder %v1803, 0.0
        %vm1836 = vcmp.ge.f32.partialorder %v1804, 0.0
        %vm1837 = vcmp.ge.f32.partialorder %v1805, 0.0
        %vm1838 = vcmp.ge.f32.partialorder %v1806, 0.0
        %vm1839 = vcmp.ge.f32.partialorder %v1807, 0.0
        %vm1840 = vcmp.ge.f32.partialorder %v1808, 0.0
        %vm1841 = vcmp.ge.f32.partialorder %v1809, 0.0
        %vm1842 = vcmp.ge.f32.partialorder %v1810, 0.0
        %vm1843 = vcmp.ge.f32.partialorder %v1811, 0.0
        %vm1844 = vcmp.ge.f32.partialorder %v1812, 0.0
        %vm1845 = vcmp.ge.f32.partialorder %v1813, 0.0
        %vm1846 = vcmp.ge.f32.partialorder %v1814, 0.0
        %vm1847 = vcmp.ge.f32.partialorder %v1815, 0.0
        %vm1848 = vcmp.ge.f32.partialorder %v1816, 0.0
        %vm1849 = vcmp.ge.f32.partialorder %v1817, 0.0
        %vm1850 = vcmp.ge.f32.partialorder %v1818, 0.0
        %vm1851 = vcmp.ge.f32.partialorder %v1819, 0.0
        %vm1852 = vcmp.ge.f32.partialorder %v1820, 0.0
        %vm1853 = vcmp.ge.f32.partialorder %v1821, 0.0
        %vm1854 = vcmp.ge.f32.partialorder %v1822, 0.0
        %vm1855 = vcmp.ge.f32.partialorder %v1823, 0.0
        %vm1856 = vcmp.ge.f32.partialorder %v1824, 0.0
        %vm1857 = vcmp.ge.f32.partialorder %v1825, 0.0
        %vm1858 = vcmp.ge.f32.partialorder %v1826, 0.0
        %vm1859 = vcmp.ge.f32.partialorder %v1827, 0.0
        %1860 = vset.pattern.permute.xlu0 7
        %1861 = vperm.xlu0 %1860, %v262
        %v1862 = vpop.permute.xlu0 %1861
        %1864 = vset.pattern.permute.xlu0 7
        %1865 = vperm.xlu0 %1864, %v263
        %v1866 = vpop.permute.xlu0 %1865
        %1868 = vset.pattern.permute.xlu0 7
        %1869 = vperm.xlu0 %1868, %v264
        %v1870 = vpop.permute.xlu0 %1869
        %1872 = vset.pattern.permute.xlu0 7
        %1873 = vperm.xlu0 %1872, %v265
        %v1874 = vpop.permute.xlu0 %1873
        %1876 = vset.pattern.permute.xlu0 7
        %1877 = vperm.xlu0 %1876, %v266
        %v1878 = vpop.permute.xlu0 %1877
        %1880 = vset.pattern.permute.xlu0 7
        %1881 = vperm.xlu0 %1880, %v267
        %v1882 = vpop.permute.xlu0 %1881
        %1884 = vset.pattern.permute.xlu0 7
        %1885 = vperm.xlu0 %1884, %v268
        %v1886 = vpop.permute.xlu0 %1885
        %1888 = vset.pattern.permute.xlu0 7
        %1889 = vperm.xlu0 %1888, %v269
        %v1890 = vpop.permute.xlu0 %1889
        %1892 = vset.pattern.permute.xlu0 7
        %1893 = vperm.xlu0 %1892, %v270
        %v1894 = vpop.permute.xlu0 %1893
        %1896 = vset.pattern.permute.xlu0 7
        %1897 = vperm.xlu0 %1896, %v271
        %v1898 = vpop.permute.xlu0 %1897
        %1900 = vset.pattern.permute.xlu0 7
        %1901 = vperm.xlu0 %1900, %v272
        %v1902 = vpop.permute.xlu0 %1901
        %1904 = vset.pattern.permute.xlu0 7
        %1905 = vperm.xlu0 %1904, %v273
        %v1906 = vpop.permute.xlu0 %1905
        %1908 = vset.pattern.permute.xlu0 7
        %1909 = vperm.xlu0 %1908, %v274
        %v1910 = vpop.permute.xlu0 %1909
        %1912 = vset.pattern.permute.xlu0 7
        %1913 = vperm.xlu0 %1912, %v275
        %v1914 = vpop.permute.xlu0 %1913
        %1916 = vset.pattern.permute.xlu0 7
        %1917 = vperm.xlu0 %1916, %v276
        %v1918 = vpop.permute.xlu0 %1917
        %1920 = vset.pattern.permute.xlu0 7
        %1921 = vperm.xlu0 %1920, %v277
        %v1922 = vpop.permute.xlu0 %1921
        %v1924 = vmul.f32 %v1862, %v1796
        %v1925 = vmul.f32 %v1862, %v1797
        %v1926 = vmul.f32 %v1866, %v1798
        %v1927 = vmul.f32 %v1866, %v1799
        %v1928 = vmul.f32 %v1870, %v1800
        %v1929 = vmul.f32 %v1870, %v1801
        %v1930 = vmul.f32 %v1874, %v1802
        %v1931 = vmul.f32 %v1874, %v1803
        %v1932 = vmul.f32 %v1878, %v1804
        %v1933 = vmul.f32 %v1878, %v1805
        %v1934 = vmul.f32 %v1882, %v1806
        %v1935 = vmul.f32 %v1882, %v1807
        %v1936 = vmul.f32 %v1886, %v1808
        %v1937 = vmul.f32 %v1886, %v1809
        %v1938 = vmul.f32 %v1890, %v1810
        %v1939 = vmul.f32 %v1890, %v1811
        %v1940 = vmul.f32 %v1894, %v1812
        %v1941 = vmul.f32 %v1894, %v1813
        %v1942 = vmul.f32 %v1898, %v1814
        %v1943 = vmul.f32 %v1898, %v1815
        %v1944 = vmul.f32 %v1902, %v1816
        %v1945 = vmul.f32 %v1902, %v1817
        %v1946 = vmul.f32 %v1906, %v1818
        %v1947 = vmul.f32 %v1906, %v1819
        %v1948 = vmul.f32 %v1910, %v1820
        %v1949 = vmul.f32 %v1910, %v1821
        %v1950 = vmul.f32 %v1914, %v1822
        %v1951 = vmul.f32 %v1914, %v1823
        %v1952 = vmul.f32 %v1918, %v1824
        %v1953 = vmul.f32 %v1918, %v1825
        %v1954 = vmul.f32 %v1922, %v1826
        %v1955 = vmul.f32 %v1922, %v1827
        %v1956 = vsel %vm1828, %v1796, %v1924
        %v1957 = vsel %vm1829, %v1797, %v1925
        %v1958 = vsel %vm1830, %v1798, %v1926
        %v1959 = vsel %vm1831, %v1799, %v1927
        %v1960 = vsel %vm1832, %v1800, %v1928
        %v1961 = vsel %vm1833, %v1801, %v1929
        %v1962 = vsel %vm1834, %v1802, %v1930
        %v1963 = vsel %vm1835, %v1803, %v1931
        %v1964 = vsel %vm1836, %v1804, %v1932
        %v1965 = vsel %vm1837, %v1805, %v1933
        %v1966 = vsel %vm1838, %v1806, %v1934
        %v1967 = vsel %vm1839, %v1807, %v1935
        %v1968 = vsel %vm1840, %v1808, %v1936
        %v1969 = vsel %vm1841, %v1809, %v1937
        %v1970 = vsel %vm1842, %v1810, %v1938
        %v1971 = vsel %vm1843, %v1811, %v1939
        %v1972 = vsel %vm1844, %v1812, %v1940
        %v1973 = vsel %vm1845, %v1813, %v1941
        %v1974 = vsel %vm1846, %v1814, %v1942
        %v1975 = vsel %vm1847, %v1815, %v1943
        %v1976 = vsel %vm1848, %v1816, %v1944
        %v1977 = vsel %vm1849, %v1817, %v1945
        %v1978 = vsel %vm1850, %v1818, %v1946
        %v1979 = vsel %vm1851, %v1819, %v1947
        %v1980 = vsel %vm1852, %v1820, %v1948
        %v1981 = vsel %vm1853, %v1821, %v1949
        %v1982 = vsel %vm1854, %v1822, %v1950
        %v1983 = vsel %vm1855, %v1823, %v1951
        %v1984 = vsel %vm1856, %v1824, %v1952
        %v1985 = vsel %vm1857, %v1825, %v1953
        %v1986 = vsel %vm1858, %v1826, %v1954
        %v1987 = vsel %vm1859, %v1827, %v1955
        %2020 = vrot.lane.b32.xlu0 %v1956, 2
        %v2021 = vpop.permute.xlu0 %2020
        %2022 = vrot.lane.b32.xlu0 %v1957, 2
        %v2023 = vpop.permute.xlu0 %2022
        %2024 = vrot.lane.b32.xlu0 %v1958, 2
        %v2025 = vpop.permute.xlu0 %2024
        %2026 = vrot.lane.b32.xlu0 %v1959, 2
        %v2027 = vpop.permute.xlu0 %2026
        %2028 = vrot.lane.b32.xlu0 %v1960, 2
        %v2029 = vpop.permute.xlu0 %2028
        %2030 = vrot.lane.b32.xlu0 %v1961, 2
        %v2031 = vpop.permute.xlu0 %2030
        %2032 = vrot.lane.b32.xlu0 %v1962, 2
        %v2033 = vpop.permute.xlu0 %2032
        %2034 = vrot.lane.b32.xlu0 %v1963, 2
        %v2035 = vpop.permute.xlu0 %2034
        %2036 = vrot.lane.b32.xlu0 %v1964, 2
        %v2037 = vpop.permute.xlu0 %2036
        %2038 = vrot.lane.b32.xlu0 %v1965, 2
        %v2039 = vpop.permute.xlu0 %2038
        %2040 = vrot.lane.b32.xlu0 %v1966, 2
        %v2041 = vpop.permute.xlu0 %2040
        %2042 = vrot.lane.b32.xlu0 %v1967, 2
        %v2043 = vpop.permute.xlu0 %2042
        %2044 = vrot.lane.b32.xlu0 %v1968, 2
        %v2045 = vpop.permute.xlu0 %2044
        %2046 = vrot.lane.b32.xlu0 %v1969, 2
        %v2047 = vpop.permute.xlu0 %2046
        %2048 = vrot.lane.b32.xlu0 %v1970, 2
        %v2049 = vpop.permute.xlu0 %2048
        %2050 = vrot.lane.b32.xlu0 %v1971, 2
        %v2051 = vpop.permute.xlu0 %2050
        %2052 = vrot.lane.b32.xlu0 %v1972, 2
        %v2053 = vpop.permute.xlu0 %2052
        %2054 = vrot.lane.b32.xlu0 %v1973, 2
        %v2055 = vpop.permute.xlu0 %2054
        %2056 = vrot.lane.b32.xlu0 %v1974, 2
        %v2057 = vpop.permute.xlu0 %2056
        %2058 = vrot.lane.b32.xlu0 %v1975, 2
        %v2059 = vpop.permute.xlu0 %2058
        %2060 = vrot.lane.b32.xlu0 %v1976, 2
        %v2061 = vpop.permute.xlu0 %2060
        %2062 = vrot.lane.b32.xlu0 %v1977, 2
        %v2063 = vpop.permute.xlu0 %2062
        %2064 = vrot.lane.b32.xlu0 %v1978, 2
        %v2065 = vpop.permute.xlu0 %2064
        %2066 = vrot.lane.b32.xlu0 %v1979, 2
        %v2067 = vpop.permute.xlu0 %2066
        %2068 = vrot.lane.b32.xlu0 %v1980, 2
        %v2069 = vpop.permute.xlu0 %2068
        %2070 = vrot.lane.b32.xlu0 %v1981, 2
        %v2071 = vpop.permute.xlu0 %2070
        %2072 = vrot.lane.b32.xlu0 %v1982, 2
        %v2073 = vpop.permute.xlu0 %2072
        %2074 = vrot.lane.b32.xlu0 %v1983, 2
        %v2075 = vpop.permute.xlu0 %2074
        %2076 = vrot.lane.b32.xlu0 %v1984, 2
        %v2077 = vpop.permute.xlu0 %2076
        %2078 = vrot.lane.b32.xlu0 %v1985, 2
        %v2079 = vpop.permute.xlu0 %2078
        %2080 = vrot.lane.b32.xlu0 %v1986, 2
        %v2081 = vpop.permute.xlu0 %2080
        %2082 = vrot.lane.b32.xlu0 %v1987, 2
        %v2083 = vpop.permute.xlu0 %2082
        %vm2084 = vcmask 15360
        %v2085 = vsel %vm2084, %v2021, %v2023
        %v2086 = vsel %vm2084, %v2025, %v2027
        %v2087 = vsel %vm2084, %v2029, %v2031
        %v2088 = vsel %vm2084, %v2033, %v2035
        %v2089 = vsel %vm2084, %v2037, %v2039
        %v2090 = vsel %vm2084, %v2041, %v2043
        %v2091 = vsel %vm2084, %v2045, %v2047
        %v2092 = vsel %vm2084, %v2049, %v2051
        %v2093 = vsel %vm2084, %v2053, %v2055
        %v2094 = vsel %vm2084, %v2057, %v2059
        %v2095 = vsel %vm2084, %v2061, %v2063
        %v2096 = vsel %vm2084, %v2065, %v2067
        %v2097 = vsel %vm2084, %v2069, %v2071
        %v2098 = vsel %vm2084, %v2073, %v2075
        %v2099 = vsel %vm2084, %v2077, %v2079
        %v2100 = vsel %vm2084, %v2081, %v2083
        %v2117 = vadd.f32 %v2085, %v2086
        %v2118 = vadd.f32 %v2117, %v2087
        %v2119 = vadd.f32 %v2118, %v2088
        %v2120 = vadd.f32 %v2119, %v2089
        %v2121 = vadd.f32 %v2120, %v2090
        %v2122 = vadd.f32 %v2121, %v2091
        %v2123 = vadd.f32 %v2122, %v2092
        %v2124 = vadd.f32 %v2123, %v2093
        %v2125 = vadd.f32 %v2124, %v2094
        %v2126 = vadd.f32 %v2125, %v2095
        %v2127 = vadd.f32 %v2126, %v2096
        %v2128 = vadd.f32 %v2127, %v2097
        %v2129 = vadd.f32 %v2128, %v2098
        %v2130 = vadd.f32 %v2129, %v2099
        %v2131 = vadd.f32 %v2130, %v2100
        %2132 = vadd.xlane.f32.xlu0 %v2131
        %v2133 = vpop.xlane.xlu0 %2132
        %v2134 = vrot.slane %v2133, 4
        %v2135 = vadd.f32 %v2133, %v2134
        %v2136 = vrot.slane %v2135, 2
        %v2137 = vadd.f32 %v2135, %v2136
        %v2138 = vrot.slane %v2137, 1
        %v2139 = vadd.f32 %v2137, %v2138
        %s2140 = vtos %v2139
        %v2141 = vmul.f32 %v1956, %v1956
        %v2142 = vmul.f32 %v1957, %v1957
        %v2143 = vmul.f32 %v1958, %v1958
        %v2144 = vmul.f32 %v1959, %v1959
        %v2145 = vmul.f32 %v1960, %v1960
        %v2146 = vmul.f32 %v1961, %v1961
        %v2147 = vmul.f32 %v1962, %v1962
        %v2148 = vmul.f32 %v1963, %v1963
        %v2149 = vmul.f32 %v1964, %v1964
        %v2150 = vmul.f32 %v1965, %v1965
        %v2151 = vmul.f32 %v1966, %v1966
        %v2152 = vmul.f32 %v1967, %v1967
        %v2153 = vmul.f32 %v1968, %v1968
        %v2154 = vmul.f32 %v1969, %v1969
        %v2155 = vmul.f32 %v1970, %v1970
        %v2156 = vmul.f32 %v1971, %v1971
        %v2157 = vmul.f32 %v1972, %v1972
        %v2158 = vmul.f32 %v1973, %v1973
        %v2159 = vmul.f32 %v1974, %v1974
        %v2160 = vmul.f32 %v1975, %v1975
        %v2161 = vmul.f32 %v1976, %v1976
        %v2162 = vmul.f32 %v1977, %v1977
        %v2163 = vmul.f32 %v1978, %v1978
        %v2164 = vmul.f32 %v1979, %v1979
        %v2165 = vmul.f32 %v1980, %v1980
        %v2166 = vmul.f32 %v1981, %v1981
        %v2167 = vmul.f32 %v1982, %v1982
        %v2168 = vmul.f32 %v1983, %v1983
        %v2169 = vmul.f32 %v1984, %v1984
        %v2170 = vmul.f32 %v1985, %v1985
        %v2171 = vmul.f32 %v1986, %v1986
        %v2172 = vmul.f32 %v1987, %v1987
        %2205 = vrot.lane.b32.xlu0 %v2141, 2
        %v2206 = vpop.permute.xlu0 %2205
        %2207 = vrot.lane.b32.xlu0 %v2142, 2
        %v2208 = vpop.permute.xlu0 %2207
        %2209 = vrot.lane.b32.xlu0 %v2143, 2
        %v2210 = vpop.permute.xlu0 %2209
        %2211 = vrot.lane.b32.xlu0 %v2144, 2
        %v2212 = vpop.permute.xlu0 %2211
        %2213 = vrot.lane.b32.xlu0 %v2145, 2
        %v2214 = vpop.permute.xlu0 %2213
        %2215 = vrot.lane.b32.xlu0 %v2146, 2
        %v2216 = vpop.permute.xlu0 %2215
        %2217 = vrot.lane.b32.xlu0 %v2147, 2
        %v2218 = vpop.permute.xlu0 %2217
        %2219 = vrot.lane.b32.xlu0 %v2148, 2
        %v2220 = vpop.permute.xlu0 %2219
        %2221 = vrot.lane.b32.xlu0 %v2149, 2
        %v2222 = vpop.permute.xlu0 %2221
        %2223 = vrot.lane.b32.xlu0 %v2150, 2
        %v2224 = vpop.permute.xlu0 %2223
        %2225 = vrot.lane.b32.xlu0 %v2151, 2
        %v2226 = vpop.permute.xlu0 %2225
        %2227 = vrot.lane.b32.xlu0 %v2152, 2
        %v2228 = vpop.permute.xlu0 %2227
        %2229 = vrot.lane.b32.xlu0 %v2153, 2
        %v2230 = vpop.permute.xlu0 %2229
        %2231 = vrot.lane.b32.xlu0 %v2154, 2
        %v2232 = vpop.permute.xlu0 %2231
        %2233 = vrot.lane.b32.xlu0 %v2155, 2
        %v2234 = vpop.permute.xlu0 %2233
        %2235 = vrot.lane.b32.xlu0 %v2156, 2
        %v2236 = vpop.permute.xlu0 %2235
        %2237 = vrot.lane.b32.xlu0 %v2157, 2
        %v2238 = vpop.permute.xlu0 %2237
        %2239 = vrot.lane.b32.xlu0 %v2158, 2
        %v2240 = vpop.permute.xlu0 %2239
        %2241 = vrot.lane.b32.xlu0 %v2159, 2
        %v2242 = vpop.permute.xlu0 %2241
        %2243 = vrot.lane.b32.xlu0 %v2160, 2
        %v2244 = vpop.permute.xlu0 %2243
        %2245 = vrot.lane.b32.xlu0 %v2161, 2
        %v2246 = vpop.permute.xlu0 %2245
        %2247 = vrot.lane.b32.xlu0 %v2162, 2
        %v2248 = vpop.permute.xlu0 %2247
        %2249 = vrot.lane.b32.xlu0 %v2163, 2
        %v2250 = vpop.permute.xlu0 %2249
        %2251 = vrot.lane.b32.xlu0 %v2164, 2
        %v2252 = vpop.permute.xlu0 %2251
        %2253 = vrot.lane.b32.xlu0 %v2165, 2
        %v2254 = vpop.permute.xlu0 %2253
        %2255 = vrot.lane.b32.xlu0 %v2166, 2
        %v2256 = vpop.permute.xlu0 %2255
        %2257 = vrot.lane.b32.xlu0 %v2167, 2
        %v2258 = vpop.permute.xlu0 %2257
        %2259 = vrot.lane.b32.xlu0 %v2168, 2
        %v2260 = vpop.permute.xlu0 %2259
        %2261 = vrot.lane.b32.xlu0 %v2169, 2
        %v2262 = vpop.permute.xlu0 %2261
        %2263 = vrot.lane.b32.xlu0 %v2170, 2
        %v2264 = vpop.permute.xlu0 %2263
        %2265 = vrot.lane.b32.xlu0 %v2171, 2
        %v2266 = vpop.permute.xlu0 %2265
        %2267 = vrot.lane.b32.xlu0 %v2172, 2
        %v2268 = vpop.permute.xlu0 %2267
        %v2269 = vsel %vm2084, %v2206, %v2208
        %v2270 = vsel %vm2084, %v2210, %v2212
        %v2271 = vsel %vm2084, %v2214, %v2216
        %v2272 = vsel %vm2084, %v2218, %v2220
        %v2273 = vsel %vm2084, %v2222, %v2224
        %v2274 = vsel %vm2084, %v2226, %v2228
        %v2275 = vsel %vm2084, %v2230, %v2232
        %v2276 = vsel %vm2084, %v2234, %v2236
        %v2277 = vsel %vm2084, %v2238, %v2240
        %v2278 = vsel %vm2084, %v2242, %v2244
        %v2279 = vsel %vm2084, %v2246, %v2248
        %v2280 = vsel %vm2084, %v2250, %v2252
        %v2281 = vsel %vm2084, %v2254, %v2256
        %v2282 = vsel %vm2084, %v2258, %v2260
        %v2283 = vsel %vm2084, %v2262, %v2264
        %v2284 = vsel %vm2084, %v2266, %v2268
        %v2301 = vadd.f32 %v2269, %v2270
        %v2302 = vadd.f32 %v2301, %v2271
        %v2303 = vadd.f32 %v2302, %v2272
        %v2304 = vadd.f32 %v2303, %v2273
        %v2305 = vadd.f32 %v2304, %v2274
        %v2306 = vadd.f32 %v2305, %v2275
        %v2307 = vadd.f32 %v2306, %v2276
        %v2308 = vadd.f32 %v2307, %v2277
        %v2309 = vadd.f32 %v2308, %v2278
        %v2310 = vadd.f32 %v2309, %v2279
        %v2311 = vadd.f32 %v2310, %v2280
        %v2312 = vadd.f32 %v2311, %v2281
        %v2313 = vadd.f32 %v2312, %v2282
        %v2314 = vadd.f32 %v2313, %v2283
        %v2315 = vadd.f32 %v2314, %v2284
        %2316 = vadd.xlane.f32.xlu0 %v2315
        %v2317 = vpop.xlane.xlu0 %2316
        %v2318 = vrot.slane %v2317, 4
        %v2319 = vadd.f32 %v2317, %v2318
        %v2320 = vrot.slane %v2319, 2
        %v2321 = vadd.f32 %v2319, %v2320
        %v2322 = vrot.slane %v2321, 1
        %v2323 = vadd.f32 %v2321, %v2322
        %s2324 = vtos %v2323
        %s2325 = smul.f32 %s2140, 6.1035156e-05
        %s2326 = smul.f32 %s2324, 6.1035156e-05
        %s2327 = smul.f32 %s2325, %s2325
        %s2328 = ssub.f32 %s2326, %s2327
        %s2329 = smax.f32 %s2328, 0.0
        %s2330 = sadd.f32 %s2329, 1e-08
        %v2331 = vstv %s2330
        %v2332 = vrsqrt.pop %v2331
        %s2333 = vtos %v2332
        %v2334 = vstv %s2333
        %v2335 = vmul.f32 %v2334, %v262
        %v2336 = vmul.f32 %v2334, %v263
        %v2337 = vmul.f32 %v2334, %v264
        %v2338 = vmul.f32 %v2334, %v265
        %v2339 = vmul.f32 %v2334, %v266
        %v2340 = vmul.f32 %v2334, %v267
        %v2341 = vmul.f32 %v2334, %v268
        %v2342 = vmul.f32 %v2334, %v269
        %v2343 = vmul.f32 %v2334, %v270
        %v2344 = vmul.f32 %v2334, %v271
        %v2345 = vmul.f32 %v2334, %v272
        %v2346 = vmul.f32 %v2334, %v273
        %v2347 = vmul.f32 %v2334, %v274
        %v2348 = vmul.f32 %v2334, %v275
        %v2349 = vmul.f32 %v2334, %v276
        %v2350 = vmul.f32 %v2334, %v277
        %v2351 = vstv %s2325
        %v2352 = vmul.f32 %v2351, %v2335
        %v2353 = vmul.f32 %v2351, %v2336
        %v2354 = vmul.f32 %v2351, %v2337
        %v2355 = vmul.f32 %v2351, %v2338
        %v2356 = vmul.f32 %v2351, %v2339
        %v2357 = vmul.f32 %v2351, %v2340
        %v2358 = vmul.f32 %v2351, %v2341
        %v2359 = vmul.f32 %v2351, %v2342
        %v2360 = vmul.f32 %v2351, %v2343
        %v2361 = vmul.f32 %v2351, %v2344
        %v2362 = vmul.f32 %v2351, %v2345
        %v2363 = vmul.f32 %v2351, %v2346
        %v2364 = vmul.f32 %v2351, %v2347
        %v2365 = vmul.f32 %v2351, %v2348
        %v2366 = vmul.f32 %v2351, %v2349
        %v2367 = vmul.f32 %v2351, %v2350
        %2384 = vrot.lane.b32.xlu0 %v2352, 1
        %v2385 = vpop.permute.xlu0 %2384
        %2386 = vrot.lane.b32.xlu0 %v2353, 1
        %v2387 = vpop.permute.xlu0 %2386
        %2388 = vrot.lane.b32.xlu0 %v2354, 1
        %v2389 = vpop.permute.xlu0 %2388
        %2390 = vrot.lane.b32.xlu0 %v2355, 1
        %v2391 = vpop.permute.xlu0 %2390
        %2392 = vrot.lane.b32.xlu0 %v2356, 1
        %v2393 = vpop.permute.xlu0 %2392
        %2394 = vrot.lane.b32.xlu0 %v2357, 1
        %v2395 = vpop.permute.xlu0 %2394
        %2396 = vrot.lane.b32.xlu0 %v2358, 1
        %v2397 = vpop.permute.xlu0 %2396
        %2398 = vrot.lane.b32.xlu0 %v2359, 1
        %v2399 = vpop.permute.xlu0 %2398
        %2400 = vrot.lane.b32.xlu0 %v2360, 1
        %v2401 = vpop.permute.xlu0 %2400
        %2402 = vrot.lane.b32.xlu0 %v2361, 1
        %v2403 = vpop.permute.xlu0 %2402
        %2404 = vrot.lane.b32.xlu0 %v2362, 1
        %v2405 = vpop.permute.xlu0 %2404
        %2406 = vrot.lane.b32.xlu0 %v2363, 1
        %v2407 = vpop.permute.xlu0 %2406
        %2408 = vrot.lane.b32.xlu0 %v2364, 1
        %v2409 = vpop.permute.xlu0 %2408
        %2410 = vrot.lane.b32.xlu0 %v2365, 1
        %v2411 = vpop.permute.xlu0 %2410
        %2412 = vrot.lane.b32.xlu0 %v2366, 1
        %v2413 = vpop.permute.xlu0 %2412
        %2414 = vrot.lane.b32.xlu0 %v2367, 1
        %v2415 = vpop.permute.xlu0 %2414
        %v2432 = vsub.f32 %v262, %v2385
        %v2433 = vsub.f32 %v263, %v2387
        %v2434 = vsub.f32 %v264, %v2389
        %v2435 = vsub.f32 %v265, %v2391
        %v2436 = vsub.f32 %v266, %v2393
        %v2437 = vsub.f32 %v267, %v2395
        %v2438 = vsub.f32 %v268, %v2397
        %v2439 = vsub.f32 %v269, %v2399
        %v2440 = vsub.f32 %v270, %v2401
        %v2441 = vsub.f32 %v271, %v2403
        %v2442 = vsub.f32 %v272, %v2405
        %v2443 = vsub.f32 %v273, %v2407
        %v2444 = vsub.f32 %v274, %v2409
        %v2445 = vsub.f32 %v275, %v2411
        %v2446 = vsub.f32 %v276, %v2413
        %v2447 = vsub.f32 %v277, %v2415
        %2449 = vset.pattern.permute.xlu0 4
        %2450 = vperm.xlu0 %2449, %v2335
        %v2451 = vpop.permute.xlu0 %2450
        %2454 = vset.pattern.permute.xlu0 4
        %2455 = vperm.xlu0 %2454, %v2336
        %v2456 = vpop.permute.xlu0 %2455
        %2459 = vset.pattern.permute.xlu0 4
        %2460 = vperm.xlu0 %2459, %v2337
        %v2461 = vpop.permute.xlu0 %2460
        %2464 = vset.pattern.permute.xlu0 4
        %2465 = vperm.xlu0 %2464, %v2338
        %v2466 = vpop.permute.xlu0 %2465
        %2469 = vset.pattern.permute.xlu0 4
        %2470 = vperm.xlu0 %2469, %v2339
        %v2471 = vpop.permute.xlu0 %2470
        %2474 = vset.pattern.permute.xlu0 4
        %2475 = vperm.xlu0 %2474, %v2340
        %v2476 = vpop.permute.xlu0 %2475
        %2479 = vset.pattern.permute.xlu0 4
        %2480 = vperm.xlu0 %2479, %v2341
        %v2481 = vpop.permute.xlu0 %2480
        %2484 = vset.pattern.permute.xlu0 4
        %2485 = vperm.xlu0 %2484, %v2342
        %v2486 = vpop.permute.xlu0 %2485
        %2489 = vset.pattern.permute.xlu0 4
        %2490 = vperm.xlu0 %2489, %v2343
        %v2491 = vpop.permute.xlu0 %2490
        %2494 = vset.pattern.permute.xlu0 4
        %2495 = vperm.xlu0 %2494, %v2344
        %v2496 = vpop.permute.xlu0 %2495
        %2499 = vset.pattern.permute.xlu0 4
        %2500 = vperm.xlu0 %2499, %v2345
        %v2501 = vpop.permute.xlu0 %2500
        %2504 = vset.pattern.permute.xlu0 4
        %2505 = vperm.xlu0 %2504, %v2346
        %v2506 = vpop.permute.xlu0 %2505
        %2509 = vset.pattern.permute.xlu0 4
        %2510 = vperm.xlu0 %2509, %v2347
        %v2511 = vpop.permute.xlu0 %2510
        %2514 = vset.pattern.permute.xlu0 4
        %2515 = vperm.xlu0 %2514, %v2348
        %v2516 = vpop.permute.xlu0 %2515
        %2519 = vset.pattern.permute.xlu0 4
        %2520 = vperm.xlu0 %2519, %v2349
        %v2521 = vpop.permute.xlu0 %2520
        %2524 = vset.pattern.permute.xlu0 4
        %2525 = vperm.xlu0 %2524, %v2350
        %v2526 = vpop.permute.xlu0 %2525
        %v2528 = vmul.f32 %v1956, %v2451
        %v2529 = vmul.f32 %v1957, %v2451
        %v2530 = vmul.f32 %v1958, %v2456
        %v2531 = vmul.f32 %v1959, %v2456
        %v2532 = vmul.f32 %v1960, %v2461
        %v2533 = vmul.f32 %v1961, %v2461
        %v2534 = vmul.f32 %v1962, %v2466
        %v2535 = vmul.f32 %v1963, %v2466
        %v2536 = vmul.f32 %v1964, %v2471
        %v2537 = vmul.f32 %v1965, %v2471
        %v2538 = vmul.f32 %v1966, %v2476
        %v2539 = vmul.f32 %v1967, %v2476
        %v2540 = vmul.f32 %v1968, %v2481
        %v2541 = vmul.f32 %v1969, %v2481
        %v2542 = vmul.f32 %v1970, %v2486
        %v2543 = vmul.f32 %v1971, %v2486
        %v2544 = vmul.f32 %v1972, %v2491
        %v2545 = vmul.f32 %v1973, %v2491
        %v2546 = vmul.f32 %v1974, %v2496
        %v2547 = vmul.f32 %v1975, %v2496
        %v2548 = vmul.f32 %v1976, %v2501
        %v2549 = vmul.f32 %v1977, %v2501
        %v2550 = vmul.f32 %v1978, %v2506
        %v2551 = vmul.f32 %v1979, %v2506
        %v2552 = vmul.f32 %v1980, %v2511
        %v2553 = vmul.f32 %v1981, %v2511
        %v2554 = vmul.f32 %v1982, %v2516
        %v2555 = vmul.f32 %v1983, %v2516
        %v2556 = vmul.f32 %v1984, %v2521
        %v2557 = vmul.f32 %v1985, %v2521
        %v2558 = vmul.f32 %v1986, %v2526
        %v2559 = vmul.f32 %v1987, %v2526
        %2561 = vset.pattern.permute.xlu0 5
        %2562 = vperm.xlu0 %2561, %v2432
        %v2563 = vpop.permute.xlu0 %2562
        %2566 = vset.pattern.permute.xlu0 5
        %2567 = vperm.xlu0 %2566, %v2433
        %v2568 = vpop.permute.xlu0 %2567
        %2571 = vset.pattern.permute.xlu0 5
        %2572 = vperm.xlu0 %2571, %v2434
        %v2573 = vpop.permute.xlu0 %2572
        %2576 = vset.pattern.permute.xlu0 5
        %2577 = vperm.xlu0 %2576, %v2435
        %v2578 = vpop.permute.xlu0 %2577
        %2581 = vset.pattern.permute.xlu0 5
        %2582 = vperm.xlu0 %2581, %v2436
        %v2583 = vpop.permute.xlu0 %2582
        %2586 = vset.pattern.permute.xlu0 5
        %2587 = vperm.xlu0 %2586, %v2437
        %v2588 = vpop.permute.xlu0 %2587
        %2591 = vset.pattern.permute.xlu0 5
        %2592 = vperm.xlu0 %2591, %v2438
        %v2593 = vpop.permute.xlu0 %2592
        %2596 = vset.pattern.permute.xlu0 5
        %2597 = vperm.xlu0 %2596, %v2439
        %v2598 = vpop.permute.xlu0 %2597
        %2601 = vset.pattern.permute.xlu0 5
        %2602 = vperm.xlu0 %2601, %v2440
        %v2603 = vpop.permute.xlu0 %2602
        %2606 = vset.pattern.permute.xlu0 5
        %2607 = vperm.xlu0 %2606, %v2441
        %v2608 = vpop.permute.xlu0 %2607
        %2611 = vset.pattern.permute.xlu0 5
        %2612 = vperm.xlu0 %2611, %v2442
        %v2613 = vpop.permute.xlu0 %2612
        %2616 = vset.pattern.permute.xlu0 5
        %2617 = vperm.xlu0 %2616, %v2443
        %v2618 = vpop.permute.xlu0 %2617
        %2621 = vset.pattern.permute.xlu0 5
        %2622 = vperm.xlu0 %2621, %v2444
        %v2623 = vpop.permute.xlu0 %2622
        %2626 = vset.pattern.permute.xlu0 5
        %2627 = vperm.xlu0 %2626, %v2445
        %v2628 = vpop.permute.xlu0 %2627
        %2631 = vset.pattern.permute.xlu0 5
        %2632 = vperm.xlu0 %2631, %v2446
        %v2633 = vpop.permute.xlu0 %2632
        %2636 = vset.pattern.permute.xlu0 5
        %2637 = vperm.xlu0 %2636, %v2447
        %v2638 = vpop.permute.xlu0 %2637
        %v2640 = vadd.f32 %v2528, %v2563
        %v2641 = vadd.f32 %v2529, %v2563
        %v2642 = vadd.f32 %v2530, %v2568
        %v2643 = vadd.f32 %v2531, %v2568
        %v2644 = vadd.f32 %v2532, %v2573
        %v2645 = vadd.f32 %v2533, %v2573
        %v2646 = vadd.f32 %v2534, %v2578
        %v2647 = vadd.f32 %v2535, %v2578
        %v2648 = vadd.f32 %v2536, %v2583
        %v2649 = vadd.f32 %v2537, %v2583
        %v2650 = vadd.f32 %v2538, %v2588
        %v2651 = vadd.f32 %v2539, %v2588
        %v2652 = vadd.f32 %v2540, %v2593
        %v2653 = vadd.f32 %v2541, %v2593
        %v2654 = vadd.f32 %v2542, %v2598
        %v2655 = vadd.f32 %v2543, %v2598
        %v2656 = vadd.f32 %v2544, %v2603
        %v2657 = vadd.f32 %v2545, %v2603
        %v2658 = vadd.f32 %v2546, %v2608
        %v2659 = vadd.f32 %v2547, %v2608
        %v2660 = vadd.f32 %v2548, %v2613
        %v2661 = vadd.f32 %v2549, %v2613
        %v2662 = vadd.f32 %v2550, %v2618
        %v2663 = vadd.f32 %v2551, %v2618
        %v2664 = vadd.f32 %v2552, %v2623
        %v2665 = vadd.f32 %v2553, %v2623
        %v2666 = vadd.f32 %v2554, %v2628
        %v2667 = vadd.f32 %v2555, %v2628
        %v2668 = vadd.f32 %v2556, %v2633
        %v2669 = vadd.f32 %v2557, %v2633
        %v2670 = vadd.f32 %v2558, %v2638
        %v2671 = vadd.f32 %v2559, %v2638
        %2673 = vset.pattern.permute.xlu0 0
        %2674 = vperm.xlu0 %2673, %v310
        %v2675 = vpop.permute.xlu0 %2674
        %2678 = vset.pattern.permute.xlu0 0
        %2679 = vperm.xlu0 %2678, %v311
        %v2680 = vpop.permute.xlu0 %2679
        %2683 = vset.pattern.permute.xlu0 0
        %2684 = vperm.xlu0 %2683, %v312
        %v2685 = vpop.permute.xlu0 %2684
        %2688 = vset.pattern.permute.xlu0 0
        %2689 = vperm.xlu0 %2688, %v313
        %v2690 = vpop.permute.xlu0 %2689
        %2693 = vset.pattern.permute.xlu0 0
        %2694 = vperm.xlu0 %2693, %v314
        %v2695 = vpop.permute.xlu0 %2694
        %2698 = vset.pattern.permute.xlu0 0
        %2699 = vperm.xlu0 %2698, %v315
        %v2700 = vpop.permute.xlu0 %2699
        %2703 = vset.pattern.permute.xlu0 0
        %2704 = vperm.xlu0 %2703, %v316
        %v2705 = vpop.permute.xlu0 %2704
        %2708 = vset.pattern.permute.xlu0 0
        %2709 = vperm.xlu0 %2708, %v317
        %v2710 = vpop.permute.xlu0 %2709
        %2713 = vset.pattern.permute.xlu0 0
        %2714 = vperm.xlu0 %2713, %v318
        %v2715 = vpop.permute.xlu0 %2714
        %2718 = vset.pattern.permute.xlu0 0
        %2719 = vperm.xlu0 %2718, %v319
        %v2720 = vpop.permute.xlu0 %2719
        %2723 = vset.pattern.permute.xlu0 0
        %2724 = vperm.xlu0 %2723, %v320
        %v2725 = vpop.permute.xlu0 %2724
        %2728 = vset.pattern.permute.xlu0 0
        %2729 = vperm.xlu0 %2728, %v321
        %v2730 = vpop.permute.xlu0 %2729
        %2733 = vset.pattern.permute.xlu0 0
        %2734 = vperm.xlu0 %2733, %v322
        %v2735 = vpop.permute.xlu0 %2734
        %2738 = vset.pattern.permute.xlu0 0
        %2739 = vperm.xlu0 %2738, %v323
        %v2740 = vpop.permute.xlu0 %2739
        %2743 = vset.pattern.permute.xlu0 0
        %2744 = vperm.xlu0 %2743, %v324
        %v2745 = vpop.permute.xlu0 %2744
        %2748 = vset.pattern.permute.xlu0 0
        %2749 = vperm.xlu0 %2748, %v325
        %v2750 = vpop.permute.xlu0 %2749
        %2784 = vrot.lane.b32.xlu0 %v2640, 2
        %v2785 = vpop.permute.xlu0 %2784
        %2786 = vrot.lane.b32.xlu0 %v2641, 2
        %v2787 = vpop.permute.xlu0 %2786
        %2788 = vrot.lane.b32.xlu0 %v2642, 2
        %v2789 = vpop.permute.xlu0 %2788
        %2790 = vrot.lane.b32.xlu0 %v2643, 2
        %v2791 = vpop.permute.xlu0 %2790
        %2792 = vrot.lane.b32.xlu0 %v2644, 2
        %v2793 = vpop.permute.xlu0 %2792
        %2794 = vrot.lane.b32.xlu0 %v2645, 2
        %v2795 = vpop.permute.xlu0 %2794
        %2796 = vrot.lane.b32.xlu0 %v2646, 2
        %v2797 = vpop.permute.xlu0 %2796
        %2798 = vrot.lane.b32.xlu0 %v2647, 2
        %v2799 = vpop.permute.xlu0 %2798
        %2800 = vrot.lane.b32.xlu0 %v2648, 2
        %v2801 = vpop.permute.xlu0 %2800
        %2802 = vrot.lane.b32.xlu0 %v2649, 2
        %v2803 = vpop.permute.xlu0 %2802
        %2804 = vrot.lane.b32.xlu0 %v2650, 2
        %v2805 = vpop.permute.xlu0 %2804
        %2806 = vrot.lane.b32.xlu0 %v2651, 2
        %v2807 = vpop.permute.xlu0 %2806
        %2808 = vrot.lane.b32.xlu0 %v2652, 2
        %v2809 = vpop.permute.xlu0 %2808
        %2810 = vrot.lane.b32.xlu0 %v2653, 2
        %v2811 = vpop.permute.xlu0 %2810
        %2812 = vrot.lane.b32.xlu0 %v2654, 2
        %v2813 = vpop.permute.xlu0 %2812
        %2814 = vrot.lane.b32.xlu0 %v2655, 2
        %v2815 = vpop.permute.xlu0 %2814
        %2816 = vrot.lane.b32.xlu0 %v2656, 2
        %v2817 = vpop.permute.xlu0 %2816
        %2818 = vrot.lane.b32.xlu0 %v2657, 2
        %v2819 = vpop.permute.xlu0 %2818
        %2820 = vrot.lane.b32.xlu0 %v2658, 2
        %v2821 = vpop.permute.xlu0 %2820
        %2822 = vrot.lane.b32.xlu0 %v2659, 2
        %v2823 = vpop.permute.xlu0 %2822
        %2824 = vrot.lane.b32.xlu0 %v2660, 2
        %v2825 = vpop.permute.xlu0 %2824
        %2826 = vrot.lane.b32.xlu0 %v2661, 2
        %v2827 = vpop.permute.xlu0 %2826
        %2828 = vrot.lane.b32.xlu0 %v2662, 2
        %v2829 = vpop.permute.xlu0 %2828
        %2830 = vrot.lane.b32.xlu0 %v2663, 2
        %v2831 = vpop.permute.xlu0 %2830
        %2832 = vrot.lane.b32.xlu0 %v2664, 2
        %v2833 = vpop.permute.xlu0 %2832
        %2834 = vrot.lane.b32.xlu0 %v2665, 2
        %v2835 = vpop.permute.xlu0 %2834
        %2836 = vrot.lane.b32.xlu0 %v2666, 2
        %v2837 = vpop.permute.xlu0 %2836
        %2838 = vrot.lane.b32.xlu0 %v2667, 2
        %v2839 = vpop.permute.xlu0 %2838
        %2840 = vrot.lane.b32.xlu0 %v2668, 2
        %v2841 = vpop.permute.xlu0 %2840
        %2842 = vrot.lane.b32.xlu0 %v2669, 2
        %v2843 = vpop.permute.xlu0 %2842
        %2844 = vrot.lane.b32.xlu0 %v2670, 2
        %v2845 = vpop.permute.xlu0 %2844
        %2846 = vrot.lane.b32.xlu0 %v2671, 2
        %v2847 = vpop.permute.xlu0 %2846
        %v2848 = vsel %vm2084, %v2785, %v2787
        %v2849 = vsel %vm2084, %v2789, %v2791
        %v2850 = vsel %vm2084, %v2793, %v2795
        %v2851 = vsel %vm2084, %v2797, %v2799
        %v2852 = vsel %vm2084, %v2801, %v2803
        %v2853 = vsel %vm2084, %v2805, %v2807
        %v2854 = vsel %vm2084, %v2809, %v2811
        %v2855 = vsel %vm2084, %v2813, %v2815
        %v2856 = vsel %vm2084, %v2817, %v2819
        %v2857 = vsel %vm2084, %v2821, %v2823
        %v2858 = vsel %vm2084, %v2825, %v2827
        %v2859 = vsel %vm2084, %v2829, %v2831
        %v2860 = vsel %vm2084, %v2833, %v2835
        %v2861 = vsel %vm2084, %v2837, %v2839
        %v2862 = vsel %vm2084, %v2841, %v2843
        %v2863 = vsel %vm2084, %v2845, %v2847
        %2880 = vmatprep.subr.mxu0 0.0
        %2881 = vmatpush1.msra.mxu0 %v2863
        %2882 = vmatprep.subr.mxu0 0.0
        %2883 = vmatpush1.msra.mxu0 %v2862
        %2884 = vmatprep.subr.mxu0 0.0
        %2885 = vmatpush1.msra.mxu0 %v2861
        %2886 = vmatprep.subr.mxu0 0.0
        %2887 = vmatpush1.msra.mxu0 %v2860
        %2888 = vmatprep.subr.mxu0 0.0
        %2889 = vmatpush1.msra.mxu0 %v2859
        %2890 = vmatprep.subr.mxu0 0.0
        %2891 = vmatpush1.msra.mxu0 %v2858
        %2892 = vmatprep.subr.mxu0 0.0
        %2893 = vmatpush1.msra.mxu0 %v2857
        %2894 = vmatprep.subr.mxu0 0.0
        %2895 = vmatpush1.msra.mxu0 %v2856
        %2896 = vmatprep.subr.mxu0 0.0
        %2897 = vmatpush1.msra.mxu0 %v2855
        %2898 = vmatprep.subr.mxu0 0.0
        %2899 = vmatpush1.msra.mxu0 %v2854
        %2900 = vmatprep.subr.mxu0 0.0
        %2901 = vmatpush1.msra.mxu0 %v2853
        %2902 = vmatprep.subr.mxu0 0.0
        %2903 = vmatpush1.msra.mxu0 %v2852
        %2904 = vmatprep.subr.mxu0 0.0
        %2905 = vmatpush1.msra.mxu0 %v2851
        %2906 = vmatprep.subr.mxu0 0.0
        %2907 = vmatpush1.msra.mxu0 %v2850
        %2908 = vmatprep.subr.mxu0 0.0
        %2909 = vmatpush1.msra.mxu0 %v2849
        %2910 = vmatprep.subr.mxu0 0.0
        %2911 = vmatpush1.msra.mxu0 %v2848
        %2912 = vmatprep.subr.mxu0 0.0
        %2913 = vmatpush2.msra.mxu0 0.0
        %2914 = vmatprep.subr.mxu0 0.0
        %2915 = vmatpush2.msra.mxu0 0.0
        %2916 = vmatprep.subr.mxu0 0.0
        %2917 = vmatpush2.msra.mxu0 0.0
        %2918 = vmatprep.subr.mxu0 0.0
        %2919 = vmatpush2.msra.mxu0 0.0
        %2920 = vmatprep.subr.mxu0 0.0
        %2921 = vmatpush2.msra.mxu0 0.0
        %2922 = vmatprep.subr.mxu0 0.0
        %2923 = vmatpush2.msra.mxu0 0.0
        %2924 = vmatprep.subr.mxu0 0.0
        %2925 = vmatpush2.msra.mxu0 0.0
        %2926 = vmatprep.subr.mxu0 0.0
        %2927 = vmatpush2.msra.mxu0 0.0
        %2928 = vmatprep.subr.mxu0 0.0
        %2929 = vmatpush2.msra.mxu0 0.0
        %2930 = vmatprep.subr.mxu0 0.0
        %2931 = vmatpush2.msra.mxu0 0.0
        %2932 = vmatprep.subr.mxu0 0.0
        %2933 = vmatpush2.msra.mxu0 0.0
        %2934 = vmatprep.subr.mxu0 0.0
        %2935 = vmatpush2.msra.mxu0 0.0
        %2936 = vmatprep.subr.mxu0 0.0
        %2937 = vmatpush2.msra.mxu0 0.0
        %2938 = vmatprep.subr.mxu0 0.0
        %2939 = vmatpush2.msra.mxu0 0.0
        %2940 = vmatprep.subr.mxu0 0.0
        %2941 = vmatpush2.msra.mxu0 0.0
        %2942 = vmatprep.subr.mxu0 0.0
        %2943 = vmatpush2.msra.mxu0 0.0
        %2944 = vmatprep.mubr.f32.mxu0 0.0
        %2945 = vmatmul.mubr.f32.gmra.mxu0 %v294
        %v2946 = vpop.f32.mrf.mxu0
        %v2947 = vadd.f32 %v2675, %v2946
        %v2948 = vpop.f32.mrf.mxu0
        %2949 = vmatprep.mubr.f32.mxu0 0.0
        %2950 = vmatmul.mubr.f32.gmra.mxu0 %v295
        %v2951 = vpop.f32.mrf.mxu0
        %v2952 = vadd.f32 %v2680, %v2951
        %v2953 = vpop.f32.mrf.mxu0
        %2954 = vmatprep.mubr.f32.mxu0 0.0
        %2955 = vmatmul.mubr.f32.gmra.mxu0 %v296
        %v2956 = vpop.f32.mrf.mxu0
        %v2957 = vadd.f32 %v2685, %v2956
        %v2958 = vpop.f32.mrf.mxu0
        %2959 = vmatprep.mubr.f32.mxu0 0.0
        %2960 = vmatmul.mubr.f32.gmra.mxu0 %v297
        %v2961 = vpop.f32.mrf.mxu0
        %v2962 = vadd.f32 %v2690, %v2961
        %v2963 = vpop.f32.mrf.mxu0
        %2964 = vmatprep.mubr.f32.mxu0 0.0
        %2965 = vmatmul.mubr.f32.gmra.mxu0 %v298
        %v2966 = vpop.f32.mrf.mxu0
        %v2967 = vadd.f32 %v2695, %v2966
        %v2968 = vpop.f32.mrf.mxu0
        %2969 = vmatprep.mubr.f32.mxu0 0.0
        %2970 = vmatmul.mubr.f32.gmra.mxu0 %v299
        %v2971 = vpop.f32.mrf.mxu0
        %v2972 = vadd.f32 %v2700, %v2971
        %v2973 = vpop.f32.mrf.mxu0
        %2974 = vmatprep.mubr.f32.mxu0 0.0
        %2975 = vmatmul.mubr.f32.gmra.mxu0 %v300
        %v2976 = vpop.f32.mrf.mxu0
        %v2977 = vadd.f32 %v2705, %v2976
        %v2978 = vpop.f32.mrf.mxu0
        %2979 = vmatprep.mubr.f32.mxu0 0.0
        %2980 = vmatmul.mubr.f32.gmra.mxu0 %v301
        %v2981 = vpop.f32.mrf.mxu0
        %v2982 = vadd.f32 %v2710, %v2981
        %v2983 = vpop.f32.mrf.mxu0
        %2984 = vmatprep.mubr.f32.mxu0 0.0
        %2985 = vmatmul.mubr.f32.gmra.mxu0 %v302
        %v2986 = vpop.f32.mrf.mxu0
        %v2987 = vadd.f32 %v2715, %v2986
        %v2988 = vpop.f32.mrf.mxu0
        %2989 = vmatprep.mubr.f32.mxu0 0.0
        %2990 = vmatmul.mubr.f32.gmra.mxu0 %v303
        %v2991 = vpop.f32.mrf.mxu0
        %v2992 = vadd.f32 %v2720, %v2991
        %v2993 = vpop.f32.mrf.mxu0
        %2994 = vmatprep.mubr.f32.mxu0 0.0
        %2995 = vmatmul.mubr.f32.gmra.mxu0 %v304
        %v2996 = vpop.f32.mrf.mxu0
        %v2997 = vadd.f32 %v2725, %v2996
        %v2998 = vpop.f32.mrf.mxu0
        %2999 = vmatprep.mubr.f32.mxu0 0.0
        %3000 = vmatmul.mubr.f32.gmra.mxu0 %v305
        %v3001 = vpop.f32.mrf.mxu0
        %v3002 = vadd.f32 %v2730, %v3001
        %v3003 = vpop.f32.mrf.mxu0
        %3004 = vmatprep.mubr.f32.mxu0 0.0
        %3005 = vmatmul.mubr.f32.gmra.mxu0 %v306
        %v3006 = vpop.f32.mrf.mxu0
        %v3007 = vadd.f32 %v2735, %v3006
        %v3008 = vpop.f32.mrf.mxu0
        %3009 = vmatprep.mubr.f32.mxu0 0.0
        %3010 = vmatmul.mubr.f32.gmra.mxu0 %v307
        %v3011 = vpop.f32.mrf.mxu0
        %v3012 = vadd.f32 %v2740, %v3011
        %v3013 = vpop.f32.mrf.mxu0
        %3014 = vmatprep.mubr.f32.mxu0 0.0
        %3015 = vmatmul.mubr.f32.gmra.mxu0 %v308
        %v3016 = vpop.f32.mrf.mxu0
        %v3017 = vadd.f32 %v2745, %v3016
        %v3018 = vpop.f32.mrf.mxu0
        %3019 = vmatprep.mubr.f32.mxu0 0.0
        %3020 = vmatmul.mubr.f32.gmra.mxu0 %v309
        %v3021 = vpop.f32.mrf.mxu0
        %v3022 = vadd.f32 %v2750, %v3021
        %v3023 = vpop.f32.mrf.mxu0
        %3024 = vdwg.mxu0
        %3025 = vst [vmem:[%s248] sm:$0xff] %v2947
        %3026 = vst [vmem:[%s248 + $0x8] sm:$0xff] %v2952
        %3027 = vst [vmem:[%s248 + $0x10] sm:$0xff] %v2957
        %3028 = vst [vmem:[%s248 + $0x18] sm:$0xff] %v2962
        %3029 = vst [vmem:[%s248 + $0x20] sm:$0xff] %v2967
        %3030 = vst [vmem:[%s248 + $0x28] sm:$0xff] %v2972
        %3031 = vst [vmem:[%s248 + $0x30] sm:$0xff] %v2977
        %3032 = vst [vmem:[%s248 + $0x38] sm:$0xff] %v2982
        %3033 = vst [vmem:[%s255] sm:$0xff] %v2987
        %3034 = vst [vmem:[%s255 + $0x8] sm:$0xff] %v2992
        %3035 = vst [vmem:[%s255 + $0x10] sm:$0xff] %v2997
        %3036 = vst [vmem:[%s255 + $0x18] sm:$0xff] %v3002
        %3037 = vst [vmem:[%s255 + $0x20] sm:$0xff] %v3007
        %3038 = vst [vmem:[%s255 + $0x28] sm:$0xff] %v3012
        %3039 = vst [vmem:[%s255 + $0x30] sm:$0xff] %v3017
        %3040 = vst [vmem:[%s255 + $0x38] sm:$0xff] %v3022
        %s3041 = sand.u32 %s142, 1
        %s3042 = scalar_lea.sflag [#allocation4], %s3041
        %s3043 = sand.u32 %s142, 1
        %s3044 = smul.addr %s3043, 64
        %s3045 = scalar_lea.vmem [#allocation3], %s3044
        %s3046 = sand.u32 %s168, 1
        %s3047 = scalar_lea.sflag [#allocation6], %s3046
        %s3048 = sand.u32 %s168, 1
        %s3049 = smul.addr %s3048, 64
        %s3050 = scalar_lea.vmem [#allocation5], %s3049
        // Predicated region
        $region41: #{tpu_custom_call.1} parent=39 // pred_check
          %p3051 = pneg %p152
        $region42: #{tpu_custom_call.1} parent=39 // pred_check_branch
          %3053 = sbr.rel (%p3051) target = $region44
        $region43: #{tpu_custom_call.1} parent=39 // pred_region
          %s3055 = ssub.s32 1024, 1024
          %3056 = vsyncadd %s3042, %s3055
          %s3057 = smul.addr %s24, 8
          %s3058 = smul.addr %s3057, 128
          %s3059 = scalar_lea.hbm %s5, %s3058
          %s3060 = sshll.u32 %s3045, 4
          %s3061 = int_to_ptr.vmem [resolvable:$true] %s3060
          %3066 = dma.vmem_to_hbm [thread:$0]  %s3061, 1024, %s3059, %s3042, 128, 128, 8
        $region44: #{tpu_custom_call.1} parent=39 // pred_fallthru
          _
        // Predicated region
        $region45: #{tpu_custom_call.1} parent=39 // pred_check
          %p3067 = pneg %p178
        $region46: #{tpu_custom_call.1} parent=39 // pred_check_branch
          %3069 = sbr.rel (%p3067) target = $region48
        $region47: #{tpu_custom_call.1} parent=39 // pred_region
          %s3071 = ssub.s32 1024, 1024
          %3072 = vsyncadd %s3047, %s3071
          %s3073 = smul.addr %s24, 8
          %s3074 = smul.addr %s3073, 128
          %s3075 = scalar_lea.hbm %s6, %s3074
          %s3076 = sshll.u32 %s3050, 4
          %s3077 = int_to_ptr.vmem [resolvable:$true] %s3076
          %3082 = dma.vmem_to_hbm [thread:$0]  %s3077, 1024, %s3075, %s3047, 128, 128, 8
        $region48: #{tpu_custom_call.1} parent=39 // pred_fallthru
          _
      $region40: #{tpu_custom_call.1} parent=5 // pred_fallthru
        _
      %p3083 = scmp.le.s32.totalorder 2, %s19
      // Predicated region
      $region49: #{tpu_custom_call.1} parent=5 // pred_check
        %p3084 = pneg %p3083
      $region50: #{tpu_custom_call.1} parent=5 // pred_check_branch
        %3086 = sbr.rel (%p3084) target = $region52
      $region51: #{tpu_custom_call.1} parent=5 // pred_region
        %s3087 = ssub.s32 %s19, 2
        // Predicated region
        $region53: #{tpu_custom_call.1} parent=51 // pred_check
          %p3088 = pneg %p158
        $region54: #{tpu_custom_call.1} parent=51 // pred_check_branch
          %3090 = sbr.rel (%p3088) target = $region56
        $region55: #{tpu_custom_call.1} parent=51 // pred_region
          %s3091 = sand.u32 %s143, 1
          %s3092 = scalar_lea.sflag [#allocation4], %s3091
          %s3093 = sand.u32 %s143, 1
          %s3094 = smul.addr %s3093, 64
          %s3095 = scalar_lea.vmem [#allocation3], %s3094
          %3096 = dma.done %s3092, 1024
        $region56: #{tpu_custom_call.1} parent=51 // pred_fallthru
          _
        // Predicated region
        $region57: #{tpu_custom_call.1} parent=51 // pred_check
          %p3097 = pneg %p184
        $region58: #{tpu_custom_call.1} parent=51 // pred_check_branch
          %3099 = sbr.rel (%p3097) target = $region60
        $region59: #{tpu_custom_call.1} parent=51 // pred_region
          %s3100 = sand.u32 %s169, 1
          %s3101 = scalar_lea.sflag [#allocation6], %s3100
          %s3102 = sand.u32 %s169, 1
          %s3103 = smul.addr %s3102, 64
          %s3104 = scalar_lea.vmem [#allocation5], %s3103
          %3105 = dma.done %s3101, 1024
        $region60: #{tpu_custom_call.1} parent=51 // pred_fallthru
          _
      $region52: #{tpu_custom_call.1} parent=5 // pred_fallthru
        _
    $region6: #{tpu_custom_call.1} parent=1 // loop_footer
      %s23 = sadd.s32 1, %s19
    $region7: #{tpu_custom_call.1} parent=1 // loop_footer_branch
      %18 = sbr.rel target = $region3
    $region8: #{tpu_custom_call.1} parent=1 // loop_exit
      _
    %3106 = vsyncpa [#allocation4], 1
    %s3107 = scalar_lea.sflag [#allocation4], 1
    %3108 = vsyncpa %s3107, 1
    %3109 = vsyncpa [#allocation6], 1
    %s3110 = scalar_lea.sflag [#allocation6], 1
    %3111 = vsyncpa %s3110, 1

</llo_original>
